<compile_context>
chip_gen: v5e
topology: v5e:2x2
jax: 0.10.0
libtpu: 0.0.40
codegen_flags: <defaults>
</compile_context>

<pallas_src>
import math

import jax
import jax.numpy as jnp
import jax.scipy.linalg as jsl
from jax.experimental import pallas as pl
from jax.experimental.pallas import tpu as pltpu


# ---------------------------------------------------------------------------
# Kernel factory (static config captured in the closure)
# ---------------------------------------------------------------------------
def _make_kernel(nb_NN, out_dim, d_freq, d_model, L1, d_in):
    DF = d_freq * d_model

    def _softmax_slab(logits, start, factor):
        # softmax over one DF-wide lane slab, scaled by `factor`
        lg = logits[:, start:start + DF]
        m = jnp.max(lg, axis=-1, keepdims=True)
        e = jnp.exp(lg - m)
        denom = jnp.sum(e, axis=-1, keepdims=True)
        return (factor * e) * pl.reciprocal(denom, approx=True)

    def kernel(x_ref,
               nn_enc_w_ref, nn_wf_ref, nn_bf_ref,
               enc_w_ref, enc_b_ref, hid_w_ref, hid_b_ref,
               dec_w_ref, dec_b_ref,
               sol_ref, nn_out_ref, proba_out_ref, prod_out_ref):
        x = x_ref[...]                                   # (tm, d_in) f32
        tm = x.shape[0]

        # small per-network params (tiny; load once as values)
        nn_enc_w = nn_enc_w_ref[...]                     # (nb_NN, d_in, d_model)
        nn_wf = nn_wf_ref[...]                           # (nb_NN, DF)
        nn_bf = nn_bf_ref[...]                           # (nb_NN, DF)  (already *pi)

        # ---- batched Proba_i + Bias_i MLPs (one fused sin-MLP) -------------
        # encoder: tiny-K contraction unrolled as VPU FMAs
        enc_w = enc_w_ref[...]                           # (d_in, G*d_model)
        acc = x[:, 0:1] * enc_w[0:1, :]
        for k in range(1, d_in):
            acc = acc + x[:, k:k + 1] * enc_w[k:k + 1, :]
        h = jnp.sin(acc + enc_b_ref[...])                # (tm, G*d_model)
        for l in range(L1):
            h = jnp.sin(
                jnp.dot(h, hid_w_ref[l], preferred_element_type=jnp.float32)
                + hid_b_ref[l])
        logits = (jnp.dot(h, dec_w_ref[...], preferred_element_type=jnp.float32)
                  + dec_b_ref[...])                      # (tm, G*DF)

        # Bias_i softmaxes (init_factor = pi/2); Proba slabs done per-n below.
        bias_vals = [_softmax_slab(logits, (nb_NN + o) * DF, math.pi / 2.0)
                     for o in range(out_dim)]

        sol_acc = jnp.zeros((tm, 1), jnp.float32)
        for n in range(nb_NN):
            # ---- NN_i: y = x @ enc_w (bias-free), unrolled tiny-K FMA ------
            w = nn_enc_w[n]                              # (d_in, d_model)
            y = x[:, 0:1] * w[0:1, :]
            for k in range(1, d_in):
                y = y + x[:, k:k + 1] * w[k:k + 1, :]
            # lane-dense frequency expansion: column index = f*d_model + m
            y_rep = jnp.concatenate([y] * d_freq, axis=-1)          # (tm, DF)
            nn_flat = y_rep * nn_wf[n:n + 1, :] + nn_bf[n:n + 1, :]

            proba = _softmax_slab(logits, n * DF, 5.0)              # (tm, DF)
            bias = bias_vals[n if out_dim == nb_NN else 0]
            prod = proba * jnp.sin(nn_flat + bias)

            # stream results straight into the lane-dense output slabs
            nn_out_ref[:, n * DF:(n + 1) * DF] = nn_flat
            proba_out_ref[:, n * DF:(n + 1) * DF] = proba
            prod_out_ref[:, n * DF:(n + 1) * DF] = prod
            sol_acc = sol_acc + jnp.sum(prod, axis=-1, keepdims=True)

        sol_ref[...] = sol_acc                           # (tm, 1)

    return kernel


# ---------------------------------------------------------------------------
# Parameter packing (done once in the wrapper, outside the kernel)
# ---------------------------------------------------------------------------
def _pack_kernel_params(params):
    nb_NN, d_in, d_model = params["p_enc_w"].shape
    out_dim = params["b_enc_w"].shape[0]
    d_freq = params["nn_wf"].shape[1]
    DF = d_freq * d_model
    L1 = params["p_hid_w"].shape[1]
    G = nb_NN + out_dim

    f32 = lambda a: a.astype(jnp.float32)

    p_blocks = lambda key, idx: [f32(params[key][n]) for n in range(nb_NN)]
    b_blocks = lambda key, idx: [f32(params[key][o]) for o in range(out_dim)]

    enc_w = jnp.concatenate([f32(params["p_enc_w"][n]) for n in range(nb_NN)]
                            + [f32(params["b_enc_w"][o]) for o in range(out_dim)],
                            axis=-1)                                  # (d_in, G*dm)
    enc_b = jnp.concatenate([f32(params["p_enc_b"][n]) for n in range(nb_NN)]
                            + [f32(params["b_enc_b"][o]) for o in range(out_dim)],
                            axis=-1)                                  # (1, G*dm)

    if L1 > 0:
        hid_w = jnp.stack([
            jsl.block_diag(*([f32(params["p_hid_w"][n, l]) for n in range(nb_NN)]
                             + [f32(params["b_hid_w"][o, l]) for o in range(out_dim)]))
            for l in range(L1)], axis=0)                              # (L1, G*dm, G*dm)
        hid_b = jnp.stack([
            jnp.concatenate([f32(params["p_hid_b"][n, l]) for n in range(nb_NN)]
                            + [f32(params["b_hid_b"][o, l]) for o in range(out_dim)],
                            axis=-1)
            for l in range(L1)], axis=0)                              # (L1, 1, G*dm)
    else:
        hid_w = jnp.zeros((1, G * d_model, G * d_model), jnp.float32)
        hid_b = jnp.zeros((1, 1, G * d_model), jnp.float32)

    dec_w = jsl.block_diag(*([f32(params["p_dec_w"][n]) for n in range(nb_NN)]
                             + [f32(params["b_dec_w"][o]) for o in range(out_dim)]))
    dec_b = jnp.concatenate([f32(params["p_dec_b"][n]) for n in range(nb_NN)]
                            + [f32(params["b_dec_b"][o]) for o in range(out_dim)],
                            axis=-1)                                  # (1, G*DF)

    nn_wf_flat = f32(params["nn_wf"]).reshape(nb_NN, DF)              # f*d_model+m order
    nn_bf_flat = (math.pi * f32(params["nn_bf"])).reshape(nb_NN, DF)  # pre-scaled by pi

    arrays = [
        f32(params["nn_enc_w"]), nn_wf_flat, nn_bf_flat,
        enc_w, enc_b, hid_w, hid_b, dec_w, dec_b,
    ]
    cfg = dict(nb_NN=nb_NN, out_dim=out_dim, d_in=d_in, d_model=d_model,
               d_freq=d_freq, DF=DF, L1=L1, G=G)
    return arrays, cfg


def _round_up(n, m):
    return ((n + m - 1) // m) * m


# ---------------------------------------------------------------------------
# Wrapper
# ---------------------------------------------------------------------------
def proba_model_forward(x, params, *, tm=1024, torch_layout=True):
    B, S, d_in = x.shape
    N = B * S

    param_arrays, cfg = _pack_kernel_params(params)
    nb_NN, out_dim = cfg["nb_NN"], cfg["out_dim"]
    DF, G, L1 = cfg["DF"], cfg["G"], cfg["L1"]
    assert d_in == cfg["d_in"]
    assert out_dim == 1 or out_dim == nb_NN, "broadcasting rule of the torch model"

    # token tile: large by default, shrunk/rounded for small problems; the
    # token axis is padded so the grid is exact.
    tm_eff = min(tm, _round_up(max(N, 1), 8))
    Npad = _round_up(N, tm_eff)
    x2 = x.reshape(N, d_in).astype(jnp.float32)
    if Npad != N:
        x2 = jnp.pad(x2, ((0, Npad - N), (0, 0)))
    grid = (Npad // tm_eff,)

    def tok_spec(shape):
        nd = len(shape)
        return pl.BlockSpec(shape, lambda i, _nd=nd: (i,) + (0,) * (_nd - 1))

    def full_spec(arr):
        nd = arr.ndim
        return pl.BlockSpec(arr.shape, lambda i, _nd=nd: (0,) * _nd)

    in_specs = [tok_spec((tm_eff, d_in))] + [full_spec(a) for a in param_arrays]

    out_shape = (
        jax.ShapeDtypeStruct((Npad, 1), jnp.float32),
        jax.ShapeDtypeStruct((Npad, nb_NN * DF), jnp.float32),
        jax.ShapeDtypeStruct((Npad, nb_NN * DF), jnp.float32),
        jax.ShapeDtypeStruct((Npad, nb_NN * DF), jnp.float32),
    )
    out_specs = [
        tok_spec((tm_eff, 1)),
        tok_spec((tm_eff, nb_NN * DF)),
        tok_spec((tm_eff, nb_NN * DF)),
        tok_spec((tm_eff, nb_NN * DF)),
    ]

    # VMEM budget: double-buffered x + outputs, resident params, intermediates.
    out_bytes = (3 * nb_NN * DF + 1) * tm_eff * 4
    in_bytes = tm_eff * d_in * 4
    param_bytes = sum(int(a.size) * 4 for a in param_arrays)
    work_bytes = 8 * tm_eff * G * DF * 4
    est = 2 * (out_bytes + in_bytes) + 2 * param_bytes + work_bytes
    vmem_limit = int(min(56 * 2 ** 20, max(32 * 2 ** 20, 2 * est)))

    kernel = _make_kernel(nb_NN, out_dim, cfg["d_freq"], cfg["d_model"], L1, d_in)

    sol, nn_t, proba_t, prod_t = pl.pallas_call(
        kernel,
        out_shape=out_shape,
        grid_spec=pltpu.PrefetchScalarGridSpec(
            num_scalar_prefetch=0,
            grid=grid,
            in_specs=in_specs,
            out_specs=out_specs,
        ),
        compiler_params=pltpu.CompilerParams(
            dimension_semantics=("parallel",),
            vmem_limit_bytes=vmem_limit,
        ),
    )(x2, *param_arrays)

    sol = sol[:N].reshape(B, S, 1)
    nn_t = nn_t[:N].reshape(B, S, nb_NN, DF)
    proba_t = proba_t[:N].reshape(B, S, nb_NN, DF)
    prod_t = prod_t[:N].reshape(B, S, nb_NN, DF)

    if torch_layout:
        # PyTorch convention (B, S, DF, nb_NN).  NOTE: this transpose re-reads
        # and re-writes the three big tensors through HBM; pass
        # torch_layout=False if the consumer accepts (B, S, nb_NN, DF).
        nn_t = jnp.transpose(nn_t, (0, 1, 3, 2))
        proba_t = jnp.transpose(proba_t, (0, 1, 3, 2))
        prod_t = jnp.transpose(prod_t, (0, 1, 3, 2))
    return sol, nn_t, proba_t, prod_t


# ---------------------------------------------------------------------------
# Deterministic parameter initialization (synthetic, no checkpoint loading)
# ---------------------------------------------------------------------------
def init_params(key, *, input_dim, d_model, d_freq, nb_hidden_layers, nb_NN, output_dim):
    assert input_dim == 2, "init mirrors Proba_Model.init_param which assumes 2 inputs"
    DF = d_model * d_freq
    L1 = nb_hidden_layers - 1
    ks = list(jax.random.split(key, 12))

    def lin(k, fan_in, shape):
        b = 1.0 / math.sqrt(fan_in)
        return jax.random.uniform(k, shape, jnp.float32, -b, b)

    # NN_i.enc weights as in Proba_Model.init_param: cos/sin of theta.
    theta = jnp.linspace(0.0, 2.0 * math.pi, d_model)
    nn_enc_w = jnp.broadcast_to(
        jnp.stack([jnp.cos(theta), jnp.sin(theta)], axis=0)[None],  # (1, 2, d_model)
        (nb_NN, input_dim, d_model),
    ).astype(jnp.float32)
    # weights_freq as in init_param(init_factor=10); bias_freq small non-zero.
    nn_wf = jnp.broadcast_to(
        jnp.linspace(2.0, 10.0, d_freq, dtype=jnp.float32)[None, :, None],
        (nb_NN, d_freq, d_model),
    ).astype(jnp.float32)
    nn_bf = 0.05 * jnp.ones((nb_NN, d_freq, d_model), jnp.float32)

    return {
        "nn_enc_w": nn_enc_w,
        "nn_wf": nn_wf,
        "nn_bf": nn_bf,
        # Proba_i networks (nb_NN of them)
        "p_enc_w": lin(ks[0], input_dim, (nb_NN, input_dim, d_model)),
        "p_enc_b": lin(ks[1], input_dim, (nb_NN, 1, d_model)),
        "p_hid_w": lin(ks[2], d_model, (nb_NN, L1, d_model, d_model)),
        "p_hid_b": lin(ks[3], d_model, (nb_NN, L1, 1, d_model)),
        "p_dec_w": lin(ks[4], d_model, (nb_NN, d_model, DF)),
        "p_dec_b": lin(ks[5], d_model, (nb_NN, 1, DF)),
        # Bias_i networks (output_dim of them)
        "b_enc_w": lin(ks[6], input_dim, (output_dim, input_dim, d_model)),
        "b_enc_b": lin(ks[7], input_dim, (output_dim, 1, d_model)),
        "b_hid_w": lin(ks[8], d_model, (output_dim, L1, d_model, d_model)),
        "b_hid_b": lin(ks[9], d_model, (output_dim, L1, 1, d_model)),
        "b_dec_w": lin(ks[10], d_model, (output_dim, d_model, DF)),
        "b_dec_b": lin(ks[11], d_model, (output_dim, 1, DF)),
    }


# ---------------------------------------------------------------------------
# Pure-JAX reference (mirrors the PyTorch forward exactly)
# ---------------------------------------------------------------------------
def proba_model_reference(x, params):
    B, S, _ = x.shape
    nb_NN = params["nn_enc_w"].shape[0]
    out_dim = params["b_enc_w"].shape[0]
    d_freq, d_model = params["nn_wf"].shape[1:]
    DF = d_freq * d_model

    def mlp(xx, pw, pb, hw, hb, dw, db, factor):
        h = jnp.sin(xx @ pw + pb)
        for l in range(hw.shape[0]):
            h = jnp.sin(h @ hw[l] + hb[l])
        logits = h @ dw + db
        return factor * jax.nn.softmax(logits, axis=-1)

    nn_list, p_list, b_list = [], [], []
    for n in range(nb_NN):
        y = x @ params["nn_enc_w"][n]                                   # (B,S,d_model)
        z = y[..., None, :] * params["nn_wf"][n] + math.pi * params["nn_bf"][n]
        nn_list.append(z.reshape(B, S, DF))
        p_list.append(mlp(x, params["p_enc_w"][n], params["p_enc_b"][n],
                          params["p_hid_w"][n], params["p_hid_b"][n],
                          params["p_dec_w"][n], params["p_dec_b"][n], 5.0))
    for o in range(out_dim):
        b_list.append(mlp(x, params["b_enc_w"][o], params["b_enc_b"][o],
                          params["b_hid_w"][o], params["b_hid_b"][o],
                          params["b_dec_w"][o], params["b_dec_b"][o], math.pi / 2.0))

    NN_t = jnp.stack(nn_list, axis=-1)        # (B,S,DF,nb_NN)
    P_t = jnp.stack(p_list, axis=-1)
    Bias_t = jnp.stack(b_list, axis=-1)       # (B,S,DF,out_dim)
    prod = P_t * jnp.sin(NN_t + Bias_t)
    sol = jnp.sum(jnp.sum(prod, axis=-1), axis=-1)[..., None]
    return sol, NN_t, P_t, prod


# ---------------------------------------------------------------------------
if __name__ == "__main__":
    # Small, forward-consistent shapes.
    B, S = 2, 8
    input_dim = 2
    output_dim = 1
    d_model = 32
    d_freq = 4
    nb_hidden_layers = 2
    nb_NN = 2

    key = jax.random.PRNGKey(0)
    kx, kp = jax.random.split(key)
    x = jax.random.normal(kx, (B, S, input_dim), jnp.float32)
    params = init_params(
        kp,
        input_dim=input_dim, d_model=d_model, d_freq=d_freq,
        nb_hidden_layers=nb_hidden_layers, nb_NN=nb_NN, output_dim=output_dim,
    )

    outs = proba_model_forward(x, params, tm=1024)
    outs = jax.block_until_ready(outs)

    refs = proba_model_reference(x, params)
    names = ["sol", "NN_i_tensor", "Proba_i_tensor", "prod_NN_i_Proba_i_tensor"]
    for name, got, want in zip(names, outs, refs):
        assert got.shape == want.shape, (name, got.shape, want.shape)
        err = float(jnp.max(jnp.abs(got - want)))
        scale = float(jnp.max(jnp.abs(want))) + 1.0
        assert err <= 5e-3 * scale, f"{name} mismatch: max abs err {err}"

    print("KERNEL_OK")
</pallas_src>

<mosaic_0001>
module attributes {stable_mosaic.version = 11 : i64} {
  func.func @kernel(%arg0: i32, %arg1: memref<16x2xf32, #tpu.memory_space<vmem>>, %arg2: memref<2x2x32xf32, #tpu.memory_space<vmem>>, %arg3: memref<2x128xf32, #tpu.memory_space<vmem>>, %arg4: memref<2x128xf32, #tpu.memory_space<vmem>>, %arg5: memref<2x96xf32, #tpu.memory_space<vmem>>, %arg6: memref<1x96xf32, #tpu.memory_space<vmem>>, %arg7: memref<1x96x96xf32, #tpu.memory_space<vmem>>, %arg8: memref<1x1x96xf32, #tpu.memory_space<vmem>>, %arg9: memref<96x384xf32, #tpu.memory_space<vmem>>, %arg10: memref<1x384xf32, #tpu.memory_space<vmem>>, %arg11: memref<16x1xf32, #tpu.memory_space<vmem>>, %arg12: memref<16x256xf32, #tpu.memory_space<vmem>>, %arg13: memref<16x256xf32, #tpu.memory_space<vmem>>, %arg14: memref<16x256xf32, #tpu.memory_space<vmem>>) attributes {dimension_semantics = [#tpu.dimension_semantics<parallel>], iteration_bounds = array<i64: 1>, scalar_prefetch = 0 : i64, scratch_operands = 0 : i64, tpu.core_type = #tpu.core_type<tc>, window_params = [{transform_indices = @transform_0, window_bounds = array<i64: 16, 2>}, {pipeline_mode = #tpu.pipeline_mode<synchronous>, transform_indices = @transform_1, window_bounds = array<i64: 2, 2, 32>}, {pipeline_mode = #tpu.pipeline_mode<synchronous>, transform_indices = @transform_2, window_bounds = array<i64: 2, 128>}, {pipeline_mode = #tpu.pipeline_mode<synchronous>, transform_indices = @transform_3, window_bounds = array<i64: 2, 128>}, {pipeline_mode = #tpu.pipeline_mode<synchronous>, transform_indices = @transform_4, window_bounds = array<i64: 2, 96>}, {pipeline_mode = #tpu.pipeline_mode<synchronous>, transform_indices = @transform_5, window_bounds = array<i64: 1, 96>}, {pipeline_mode = #tpu.pipeline_mode<synchronous>, transform_indices = @transform_6, window_bounds = array<i64: 1, 96, 96>}, {pipeline_mode = #tpu.pipeline_mode<synchronous>, transform_indices = @transform_7, window_bounds = array<i64: 1, 1, 96>}, {pipeline_mode = #tpu.pipeline_mode<synchronous>, transform_indices = @transform_8, window_bounds = array<i64: 96, 384>}, {pipeline_mode = #tpu.pipeline_mode<synchronous>, transform_indices = @transform_9, window_bounds = array<i64: 1, 384>}, {transform_indices = @transform_10, window_bounds = array<i64: 16, 1>}, {transform_indices = @transform_11, window_bounds = array<i64: 16, 256>}, {transform_indices = @transform_12, window_bounds = array<i64: 16, 256>}, {transform_indices = @transform_13, window_bounds = array<i64: 16, 256>}]} {
    %c0 = arith.constant 0 : index
    %c0_0 = arith.constant 0 : index
    %0 = vector.load %arg1[%c0, %c0_0] : memref<16x2xf32, #tpu.memory_space<vmem>>, vector<16x2xf32>
    %c0_1 = arith.constant 0 : index
    %c0_2 = arith.constant 0 : index
    %c0_3 = arith.constant 0 : index
    %1 = vector.load %arg2[%c0_1, %c0_2, %c0_3] : memref<2x2x32xf32, #tpu.memory_space<vmem>>, vector<2x2x32xf32>
    %c0_4 = arith.constant 0 : index
    %c0_5 = arith.constant 0 : index
    %2 = vector.load %arg3[%c0_4, %c0_5] : memref<2x128xf32, #tpu.memory_space<vmem>>, vector<2x128xf32>
    %c0_6 = arith.constant 0 : index
    %c0_7 = arith.constant 0 : index
    %3 = vector.load %arg4[%c0_6, %c0_7] : memref<2x128xf32, #tpu.memory_space<vmem>>, vector<2x128xf32>
    %c0_8 = arith.constant 0 : index
    %c0_9 = arith.constant 0 : index
    %4 = vector.load %arg5[%c0_8, %c0_9] : memref<2x96xf32, #tpu.memory_space<vmem>>, vector<2x96xf32>
    %5 = vector.extract_strided_slice %0 {offsets = [0, 0], sizes = [16, 1], strides = [1, 1]} : vector<16x2xf32> to vector<16x1xf32>
    %6 = vector.extract_strided_slice %4 {offsets = [0, 0], sizes = [1, 96], strides = [1, 1]} : vector<2x96xf32> to vector<1x96xf32>
    %7 = vector.broadcast %5 : vector<16x1xf32> to vector<16x96xf32>
    %8 = vector.broadcast %6 : vector<1x96xf32> to vector<16x96xf32>
    %9 = arith.mulf %7, %8 : vector<16x96xf32>
    %10 = vector.extract_strided_slice %0 {offsets = [0, 1], sizes = [16, 1], strides = [1, 1]} : vector<16x2xf32> to vector<16x1xf32>
    %11 = vector.extract_strided_slice %4 {offsets = [1, 0], sizes = [1, 96], strides = [1, 1]} : vector<2x96xf32> to vector<1x96xf32>
    %12 = vector.broadcast %10 : vector<16x1xf32> to vector<16x96xf32>
    %13 = vector.broadcast %11 : vector<1x96xf32> to vector<16x96xf32>
    %14 = arith.mulf %12, %13 : vector<16x96xf32>
    %15 = arith.addf %9, %14 : vector<16x96xf32>
    %c0_10 = arith.constant 0 : index
    %c0_11 = arith.constant 0 : index
    %16 = vector.load %arg6[%c0_10, %c0_11] : memref<1x96xf32, #tpu.memory_space<vmem>>, vector<1x96xf32>
    %17 = vector.broadcast %16 : vector<1x96xf32> to vector<16x96xf32>
    %18 = arith.addf %15, %17 : vector<16x96xf32>
    %19 = math.sin %18 : vector<16x96xf32>
    %c0_12 = arith.constant 0 : index
    %c0_13 = arith.constant 0 : index
    %c0_14 = arith.constant 0 : index
    %20 = vector.load %arg7[%c0_12, %c0_13, %c0_14] : memref<1x96x96xf32, #tpu.memory_space<vmem>>, vector<1x96x96xf32>
    %21 = vector.shape_cast %20 : vector<1x96x96xf32> to vector<96x96xf32>
    %cst = arith.constant dense<0.000000e+00> : vector<16x96xf32>
    %22 = tpu.matmul %19, %21, %cst {dimension_numbers = #tpu.dot_dimension_numbers<[1], [0], [0], [1], [0, 0, 1, 1], [], []>} : vector<16x96xf32>, vector<96x96xf32>, vector<16x96xf32> -> vector<16x96xf32>
    %c0_15 = arith.constant 0 : index
    %c0_16 = arith.constant 0 : index
    %c0_17 = arith.constant 0 : index
    %23 = vector.load %arg8[%c0_15, %c0_16, %c0_17] : memref<1x1x96xf32, #tpu.memory_space<vmem>>, vector<1x1x96xf32>
    %24 = vector.shape_cast %23 : vector<1x1x96xf32> to vector<1x96xf32>
    %25 = vector.broadcast %24 : vector<1x96xf32> to vector<16x96xf32>
    %26 = arith.addf %22, %25 : vector<16x96xf32>
    %27 = math.sin %26 : vector<16x96xf32>
    %c0_18 = arith.constant 0 : index
    %c0_19 = arith.constant 0 : index
    %28 = vector.load %arg9[%c0_18, %c0_19] : memref<96x384xf32, #tpu.memory_space<vmem>>, vector<96x384xf32>
    %cst_20 = arith.constant dense<0.000000e+00> : vector<16x384xf32>
    %29 = tpu.matmul %27, %28, %cst_20 {dimension_numbers = #tpu.dot_dimension_numbers<[1], [0], [0], [1], [0, 0, 1, 1], [], []>} : vector<16x96xf32>, vector<96x384xf32>, vector<16x384xf32> -> vector<16x384xf32>
    %c0_21 = arith.constant 0 : index
    %c0_22 = arith.constant 0 : index
    %30 = vector.load %arg10[%c0_21, %c0_22] : memref<1x384xf32, #tpu.memory_space<vmem>>, vector<1x384xf32>
    %31 = vector.broadcast %30 : vector<1x384xf32> to vector<16x384xf32>
    %32 = arith.addf %29, %31 : vector<16x384xf32>
    %33 = vector.extract_strided_slice %32 {offsets = [0, 256], sizes = [16, 128], strides = [1, 1]} : vector<16x384xf32> to vector<16x128xf32>
    %cst_23 = arith.constant dense<0xFF800000> : vector<16xf32>
    %34 = vector.multi_reduction <maximumf>, %33, %cst_23 [1] : vector<16x128xf32> to vector<16xf32>
    %35 = vector.shape_cast %34 : vector<16xf32> to vector<16x1xf32>
    %36 = vector.broadcast %35 : vector<16x1xf32> to vector<16x128xf32>
    %37 = arith.subf %33, %36 : vector<16x128xf32>
    %38 = math.exp %37 : vector<16x128xf32>
    %cst_24 = arith.constant dense<0.000000e+00> : vector<16xf32>
    %39 = vector.multi_reduction <add>, %38, %cst_24 [1] : vector<16x128xf32> to vector<16xf32>
    %40 = vector.shape_cast %39 : vector<16xf32> to vector<16x1xf32>
    %cst_25 = arith.constant 1.57079637 : f32
    %41 = vector.broadcast %cst_25 : f32 to vector<16x128xf32>
    %42 = arith.mulf %41, %38 : vector<16x128xf32>
    %43 = tpu.reciprocal %40 {approx = true} : vector<16x1xf32> -> vector<16x1xf32>
    %44 = vector.broadcast %43 : vector<16x1xf32> to vector<16x128xf32>
    %45 = arith.mulf %42, %44 : vector<16x128xf32>
    %cst_26 = arith.constant 0.000000e+00 : f32
    %46 = vector.broadcast %cst_26 : f32 to vector<16x1xf32>
    %47 = vector.extract_strided_slice %1 {offsets = [0, 0, 0], sizes = [1, 2, 32], strides = [1, 1, 1]} : vector<2x2x32xf32> to vector<1x2x32xf32>
    %48 = vector.shape_cast %47 : vector<1x2x32xf32> to vector<2x32xf32>
    %49 = vector.extract_strided_slice %0 {offsets = [0, 0], sizes = [16, 1], strides = [1, 1]} : vector<16x2xf32> to vector<16x1xf32>
    %50 = vector.extract_strided_slice %48 {offsets = [0, 0], sizes = [1, 32], strides = [1, 1]} : vector<2x32xf32> to vector<1x32xf32>
    %51 = vector.broadcast %49 : vector<16x1xf32> to vector<16x32xf32>
    %52 = vector.broadcast %50 : vector<1x32xf32> to vector<16x32xf32>
    %53 = arith.mulf %51, %52 : vector<16x32xf32>
    %54 = vector.extract_strided_slice %0 {offsets = [0, 1], sizes = [16, 1], strides = [1, 1]} : vector<16x2xf32> to vector<16x1xf32>
    %55 = vector.extract_strided_slice %48 {offsets = [1, 0], sizes = [1, 32], strides = [1, 1]} : vector<2x32xf32> to vector<1x32xf32>
    %56 = vector.broadcast %54 : vector<16x1xf32> to vector<16x32xf32>
    %57 = vector.broadcast %55 : vector<1x32xf32> to vector<16x32xf32>
    %58 = arith.mulf %56, %57 : vector<16x32xf32>
    %59 = arith.addf %53, %58 : vector<16x32xf32>
    %60 = tpu.concatenate %59, %59, %59, %59 in 1 : vector<16x32xf32>, vector<16x32xf32>, vector<16x32xf32>, vector<16x32xf32> -> vector<16x128xf32>
    %61 = vector.extract_strided_slice %2 {offsets = [0, 0], sizes = [1, 128], strides = [1, 1]} : vector<2x128xf32> to vector<1x128xf32>
    %62 = vector.broadcast %61 : vector<1x128xf32> to vector<16x128xf32>
    %63 = arith.mulf %60, %62 : vector<16x128xf32>
    %64 = vector.extract_strided_slice %3 {offsets = [0, 0], sizes = [1, 128], strides = [1, 1]} : vector<2x128xf32> to vector<1x128xf32>
    %65 = vector.broadcast %64 : vector<1x128xf32> to vector<16x128xf32>
    %66 = arith.addf %63, %65 : vector<16x128xf32>
    %67 = vector.extract_strided_slice %32 {offsets = [0, 0], sizes = [16, 128], strides = [1, 1]} : vector<16x384xf32> to vector<16x128xf32>
    %cst_27 = arith.constant dense<0xFF800000> : vector<16xf32>
    %68 = vector.multi_reduction <maximumf>, %67, %cst_27 [1] : vector<16x128xf32> to vector<16xf32>
    %69 = vector.shape_cast %68 : vector<16xf32> to vector<16x1xf32>
    %70 = vector.broadcast %69 : vector<16x1xf32> to vector<16x128xf32>
    %71 = arith.subf %67, %70 : vector<16x128xf32>
    %72 = math.exp %71 : vector<16x128xf32>
    %cst_28 = arith.constant dense<0.000000e+00> : vector<16xf32>
    %73 = vector.multi_reduction <add>, %72, %cst_28 [1] : vector<16x128xf32> to vector<16xf32>
    %74 = vector.shape_cast %73 : vector<16xf32> to vector<16x1xf32>
    %cst_29 = arith.constant 5.000000e+00 : f32
    %75 = vector.broadcast %cst_29 : f32 to vector<16x128xf32>
    %76 = arith.mulf %75, %72 : vector<16x128xf32>
    %77 = tpu.reciprocal %74 {approx = true} : vector<16x1xf32> -> vector<16x1xf32>
    %78 = vector.broadcast %77 : vector<16x1xf32> to vector<16x128xf32>
    %79 = arith.mulf %76, %78 : vector<16x128xf32>
    %80 = arith.addf %66, %45 : vector<16x128xf32>
    %81 = math.sin %80 : vector<16x128xf32>
    %82 = arith.mulf %79, %81 : vector<16x128xf32>
    %c0_30 = arith.constant 0 : index
    %c0_31 = arith.constant 0 : index
    %83 = vector.load %arg12[%c0_30, %c0_31] : memref<16x256xf32, #tpu.memory_space<vmem>>, vector<16x128xf32>
    tpu.vector_store %arg12[%c0_30, %c0_31], %66 {strides = array<i32>} : memref<16x256xf32, #tpu.memory_space<vmem>>, vector<16x128xf32>,
    %c0_32 = arith.constant 0 : index
    %c0_33 = arith.constant 0 : index
    %84 = vector.load %arg13[%c0_32, %c0_33] : memref<16x256xf32, #tpu.memory_space<vmem>>, vector<16x128xf32>
    tpu.vector_store %arg13[%c0_32, %c0_33], %79 {strides = array<i32>} : memref<16x256xf32, #tpu.memory_space<vmem>>, vector<16x128xf32>,
    %c0_34 = arith.constant 0 : index
    %c0_35 = arith.constant 0 : index
    %85 = vector.load %arg14[%c0_34, %c0_35] : memref<16x256xf32, #tpu.memory_space<vmem>>, vector<16x128xf32>
    tpu.vector_store %arg14[%c0_34, %c0_35], %82 {strides = array<i32>} : memref<16x256xf32, #tpu.memory_space<vmem>>, vector<16x128xf32>,
    %cst_36 = arith.constant dense<0.000000e+00> : vector<16xf32>
    %86 = vector.multi_reduction <add>, %82, %cst_36 [1] : vector<16x128xf32> to vector<16xf32>
    %87 = vector.shape_cast %86 : vector<16xf32> to vector<16x1xf32>
    %88 = arith.addf %46, %87 : vector<16x1xf32>
    %89 = vector.extract_strided_slice %1 {offsets = [1, 0, 0], sizes = [1, 2, 32], strides = [1, 1, 1]} : vector<2x2x32xf32> to vector<1x2x32xf32>
    %90 = vector.shape_cast %89 : vector<1x2x32xf32> to vector<2x32xf32>
    %91 = vector.extract_strided_slice %0 {offsets = [0, 0], sizes = [16, 1], strides = [1, 1]} : vector<16x2xf32> to vector<16x1xf32>
    %92 = vector.extract_strided_slice %90 {offsets = [0, 0], sizes = [1, 32], strides = [1, 1]} : vector<2x32xf32> to vector<1x32xf32>
    %93 = vector.broadcast %91 : vector<16x1xf32> to vector<16x32xf32>
    %94 = vector.broadcast %92 : vector<1x32xf32> to vector<16x32xf32>
    %95 = arith.mulf %93, %94 : vector<16x32xf32>
    %96 = vector.extract_strided_slice %0 {offsets = [0, 1], sizes = [16, 1], strides = [1, 1]} : vector<16x2xf32> to vector<16x1xf32>
    %97 = vector.extract_strided_slice %90 {offsets = [1, 0], sizes = [1, 32], strides = [1, 1]} : vector<2x32xf32> to vector<1x32xf32>
    %98 = vector.broadcast %96 : vector<16x1xf32> to vector<16x32xf32>
    %99 = vector.broadcast %97 : vector<1x32xf32> to vector<16x32xf32>
    %100 = arith.mulf %98, %99 : vector<16x32xf32>
    %101 = arith.addf %95, %100 : vector<16x32xf32>
    %102 = tpu.concatenate %101, %101, %101, %101 in 1 : vector<16x32xf32>, vector<16x32xf32>, vector<16x32xf32>, vector<16x32xf32> -> vector<16x128xf32>
    %103 = vector.extract_strided_slice %2 {offsets = [1, 0], sizes = [1, 128], strides = [1, 1]} : vector<2x128xf32> to vector<1x128xf32>
    %104 = vector.broadcast %103 : vector<1x128xf32> to vector<16x128xf32>
    %105 = arith.mulf %102, %104 : vector<16x128xf32>
    %106 = vector.extract_strided_slice %3 {offsets = [1, 0], sizes = [1, 128], strides = [1, 1]} : vector<2x128xf32> to vector<1x128xf32>
    %107 = vector.broadcast %106 : vector<1x128xf32> to vector<16x128xf32>
    %108 = arith.addf %105, %107 : vector<16x128xf32>
    %109 = vector.extract_strided_slice %32 {offsets = [0, 128], sizes = [16, 128], strides = [1, 1]} : vector<16x384xf32> to vector<16x128xf32>
    %cst_37 = arith.constant dense<0xFF800000> : vector<16xf32>
    %110 = vector.multi_reduction <maximumf>, %109, %cst_37 [1] : vector<16x128xf32> to vector<16xf32>
    %111 = vector.shape_cast %110 : vector<16xf32> to vector<16x1xf32>
    %112 = vector.broadcast %111 : vector<16x1xf32> to vector<16x128xf32>
    %113 = arith.subf %109, %112 : vector<16x128xf32>
    %114 = math.exp %113 : vector<16x128xf32>
    %cst_38 = arith.constant dense<0.000000e+00> : vector<16xf32>
    %115 = vector.multi_reduction <add>, %114, %cst_38 [1] : vector<16x128xf32> to vector<16xf32>
    %116 = vector.shape_cast %115 : vector<16xf32> to vector<16x1xf32>
    %cst_39 = arith.constant 5.000000e+00 : f32
    %117 = vector.broadcast %cst_39 : f32 to vector<16x128xf32>
    %118 = arith.mulf %117, %114 : vector<16x128xf32>
    %119 = tpu.reciprocal %116 {approx = true} : vector<16x1xf32> -> vector<16x1xf32>
    %120 = vector.broadcast %119 : vector<16x1xf32> to vector<16x128xf32>
    %121 = arith.mulf %118, %120 : vector<16x128xf32>
    %122 = arith.addf %108, %45 : vector<16x128xf32>
    %123 = math.sin %122 : vector<16x128xf32>
    %124 = arith.mulf %121, %123 : vector<16x128xf32>
    %c0_40 = arith.constant 0 : index
    %c128 = arith.constant 128 : index
    %125 = vector.load %arg12[%c0_40, %c128] : memref<16x256xf32, #tpu.memory_space<vmem>>, vector<16x128xf32>
    tpu.vector_store %arg12[%c0_40, %c128], %108 {strides = array<i32>} : memref<16x256xf32, #tpu.memory_space<vmem>>, vector<16x128xf32>,
    %c0_41 = arith.constant 0 : index
    %c128_42 = arith.constant 128 : index
    %126 = vector.load %arg13[%c0_41, %c128_42] : memref<16x256xf32, #tpu.memory_space<vmem>>, vector<16x128xf32>
    tpu.vector_store %arg13[%c0_41, %c128_42], %121 {strides = array<i32>} : memref<16x256xf32, #tpu.memory_space<vmem>>, vector<16x128xf32>,
    %c0_43 = arith.constant 0 : index
    %c128_44 = arith.constant 128 : index
    %127 = vector.load %arg14[%c0_43, %c128_44] : memref<16x256xf32, #tpu.memory_space<vmem>>, vector<16x128xf32>
    tpu.vector_store %arg14[%c0_43, %c128_44], %124 {strides = array<i32>} : memref<16x256xf32, #tpu.memory_space<vmem>>, vector<16x128xf32>,
    %cst_45 = arith.constant dense<0.000000e+00> : vector<16xf32>
    %128 = vector.multi_reduction <add>, %124, %cst_45 [1] : vector<16x128xf32> to vector<16xf32>
    %129 = vector.shape_cast %128 : vector<16xf32> to vector<16x1xf32>
    %130 = arith.addf %88, %129 : vector<16x1xf32>
    %c0_46 = arith.constant 0 : index
    %c0_47 = arith.constant 0 : index
    %131 = vector.load %arg11[%c0_46, %c0_47] : memref<16x1xf32, #tpu.memory_space<vmem>>, vector<16x1xf32>
    tpu.vector_store %arg11[%c0_46, %c0_47], %130 {strides = array<i32>} : memref<16x1xf32, #tpu.memory_space<vmem>>, vector<16x1xf32>,
    return
  }
  func.func @transform_0(%arg0: i32) -> (i32, i32) {
    %c0_i32 = arith.constant 0 : i32
    %c0_i32_0 = arith.constant 0 : i32
    return %arg0, %c0_i32 : i32, i32
  }
  func.func @transform_1(%arg0: i32) -> (i32, i32, i32) {
    %c0_i32 = arith.constant 0 : i32
    %c0_i32_0 = arith.constant 0 : i32
    %c0_i32_1 = arith.constant 0 : i32
    %c0_i32_2 = arith.constant 0 : i32
    return %c0_i32, %c0_i32_0, %c0_i32_1 : i32, i32, i32
  }
  func.func @transform_2(%arg0: i32) -> (i32, i32) {
    %c0_i32 = arith.constant 0 : i32
    %c0_i32_0 = arith.constant 0 : i32
    %c0_i32_1 = arith.constant 0 : i32
    return %c0_i32, %c0_i32_0 : i32, i32
  }
  func.func @transform_3(%arg0: i32) -> (i32, i32) {
    %c0_i32 = arith.constant 0 : i32
    %c0_i32_0 = arith.constant 0 : i32
    %c0_i32_1 = arith.constant 0 : i32
    return %c0_i32, %c0_i32_0 : i32, i32
  }
  func.func @transform_4(%arg0: i32) -> (i32, i32) {
    %c0_i32 = arith.constant 0 : i32
    %c0_i32_0 = arith.constant 0 : i32
    %c0_i32_1 = arith.constant 0 : i32
    return %c0_i32, %c0_i32_0 : i32, i32
  }
  func.func @transform_5(%arg0: i32) -> (i32, i32) {
    %c0_i32 = arith.constant 0 : i32
    %c0_i32_0 = arith.constant 0 : i32
    %c0_i32_1 = arith.constant 0 : i32
    return %c0_i32, %c0_i32_0 : i32, i32
  }
  func.func @transform_6(%arg0: i32) -> (i32, i32, i32) {
    %c0_i32 = arith.constant 0 : i32
    %c0_i32_0 = arith.constant 0 : i32
    %c0_i32_1 = arith.constant 0 : i32
    %c0_i32_2 = arith.constant 0 : i32
    return %c0_i32, %c0_i32_0, %c0_i32_1 : i32, i32, i32
  }
  func.func @transform_7(%arg0: i32) -> (i32, i32, i32) {
    %c0_i32 = arith.constant 0 : i32
    %c0_i32_0 = arith.constant 0 : i32
    %c0_i32_1 = arith.constant 0 : i32
    %c0_i32_2 = arith.constant 0 : i32
    return %c0_i32, %c0_i32_0, %c0_i32_1 : i32, i32, i32
  }
  func.func @transform_8(%arg0: i32) -> (i32, i32) {
    %c0_i32 = arith.constant 0 : i32
    %c0_i32_0 = arith.constant 0 : i32
    %c0_i32_1 = arith.constant 0 : i32
    return %c0_i32, %c0_i32_0 : i32, i32
  }
  func.func @transform_9(%arg0: i32) -> (i32, i32) {
    %c0_i32 = arith.constant 0 : i32
    %c0_i32_0 = arith.constant 0 : i32
    %c0_i32_1 = arith.constant 0 : i32
    return %c0_i32, %c0_i32_0 : i32, i32
  }
  func.func @transform_10(%arg0: i32) -> (i32, i32) {
    %c0_i32 = arith.constant 0 : i32
    %c0_i32_0 = arith.constant 0 : i32
    return %arg0, %c0_i32 : i32, i32
  }
  func.func @transform_11(%arg0: i32) -> (i32, i32) {
    %c0_i32 = arith.constant 0 : i32
    %c0_i32_0 = arith.constant 0 : i32
    return %arg0, %c0_i32 : i32, i32
  }
  func.func @transform_12(%arg0: i32) -> (i32, i32) {
    %c0_i32 = arith.constant 0 : i32
    %c0_i32_0 = arith.constant 0 : i32
    return %arg0, %c0_i32 : i32, i32
  }
  func.func @transform_13(%arg0: i32) -> (i32, i32) {
    %c0_i32 = arith.constant 0 : i32
    %c0_i32_0 = arith.constant 0 : i32
    return %arg0, %c0_i32 : i32, i32
  }
}

</mosaic_0001>

<llo_original>
// kernel: tpu_custom_call.1
$region0: #{tpu_custom_call.1}
  #allocation0 [shape = 'u32[]', space=smem, size = 0x4, offset = 0x4, fixed_abs, tag = 'smem constant byte address 0x4 - core index']
  #allocation1 [shape = 'u32[72,128]{1,0:T(1,128)}', space=vmem, size = 0x9000, scoped, tag = 'internal scratch']
  %s0 = inlined_call_operand.vmem [shape: f32[16,2], index: 0, kind: input, shape index: {}]
  %s1 = inlined_call_operand.vmem [shape: f32[2,2,32], index: 1, kind: input, shape index: {}]
  %s2 = inlined_call_operand.vmem [shape: f32[2,128], index: 2, kind: input, shape index: {}]
  %s3 = inlined_call_operand.vmem [shape: f32[2,128], index: 3, kind: input, shape index: {}]
  %s4 = inlined_call_operand.vmem [shape: f32[2,96], index: 4, kind: input, shape index: {}]
  %s5 = inlined_call_operand.vmem [shape: f32[1,96], index: 5, kind: input, shape index: {}]
  %s6 = inlined_call_operand.hbm [shape: f32[1,96,96], index: 6, kind: input, shape index: {}]
  %s7 = inlined_call_operand.vmem [shape: f32[1,1,96], index: 7, kind: input, shape index: {}]
  %s8 = inlined_call_operand.hbm [shape: f32[96,384], index: 8, kind: input, shape index: {}]
  %s9 = inlined_call_operand.vmem [shape: f32[1,384], index: 9, kind: input, shape index: {}]
  %s10 = inlined_call_operand.vmem [shape: f32[16,1], index: 10, kind: output, shape index: {0}]
  %s11 = inlined_call_operand.hbm [shape: f32[16,256], index: 11, kind: output, shape index: {1}]
  %s12 = inlined_call_operand.hbm [shape: f32[16,256], index: 12, kind: output, shape index: {2}]
  %s13 = inlined_call_operand.hbm [shape: f32[16,256], index: 13, kind: output, shape index: {3}]
  %14 = xla_tuple %s10, %s11, %s12, %s13
  %s15 = sld [smem:[#allocation0]]
  $region82: #{tpu_custom_call.1} parent=0
    _
  %s17 = ssub.s32 1, %s15
  %s18 = scalar_select 0, %s17, %s15
  $region1: #{tpu_custom_call.1} parent=0
    #allocation2 [shape = 'u8[49152]{0}', space=vmem, size = 0xc000, scoped, tag = 'input window, operand 6, single buffered']
    #allocation3 [shape = 's32[1]{0}', space=sflag, size = 0x4, scoped, tag = 'scoped memory for tpu_custom_call.1']
    #allocation4 [shape = 's32[1]{0}', space=sflag, size = 0x4, scoped, tag = 'scoped memory for tpu_custom_call.1']
    #allocation5 [shape = 'u8[147456]{0}', space=vmem, size = 0x24000, scoped, tag = 'input window, operand 8, single buffered']
    #allocation6 [shape = 's32[1]{0}', space=sflag, size = 0x4, scoped, tag = 'scoped memory for tpu_custom_call.1']
    #allocation7 [shape = 'u8[16384]{0}', space=vmem, size = 0x4000, scoped, tag = 'output window, operand 1, single buffered']
    #allocation8 [shape = 'u8[16384]{0}', space=vmem, size = 0x4000, scoped, tag = 'output window, operand 2, single buffered']
    #allocation9 [shape = 's32[1]{0}', space=sflag, size = 0x4, scoped, tag = 'scoped memory for tpu_custom_call.1']
    #allocation10 [shape = 'u8[16384]{0}', space=vmem, size = 0x4000, scoped, tag = 'output window, operand 3, single buffered']
    %19 = vsyncpa [#allocation3], 0
    %20 = vsyncpa [#allocation6], 0
    %21 = vsyncpa [#allocation4], 0
    %22 = vsyncpa [#allocation9], 0
    // Predicated region
    $region2: #{tpu_custom_call.1} parent=1 // pred_check
      _
    $region3: #{tpu_custom_call.1} parent=1 // pred_check_branch
      %24 = sbr.rel (0) target = $region5
    $region4: #{tpu_custom_call.1} parent=1 // pred_region
      _
    $region5: #{tpu_custom_call.1} parent=1 // pred_fallthru
      _
    // Predicated region
    $region6: #{tpu_custom_call.1} parent=1 // pred_check
      _
    $region7: #{tpu_custom_call.1} parent=1 // pred_check_branch
      %26 = sbr.rel (0) target = $region9
    $region8: #{tpu_custom_call.1} parent=1 // pred_region
      _
    $region9: #{tpu_custom_call.1} parent=1 // pred_fallthru
      _
    // Predicated region
    $region10: #{tpu_custom_call.1} parent=1 // pred_check
      _
    $region11: #{tpu_custom_call.1} parent=1 // pred_check_branch
      %28 = sbr.rel (0) target = $region13
    $region12: #{tpu_custom_call.1} parent=1 // pred_region
      _
    $region13: #{tpu_custom_call.1} parent=1 // pred_fallthru
      _
    // Predicated region
    $region14: #{tpu_custom_call.1} parent=1 // pred_check
      _
    $region15: #{tpu_custom_call.1} parent=1 // pred_check_branch
      %30 = sbr.rel (0) target = $region17
    $region16: #{tpu_custom_call.1} parent=1 // pred_region
      _
    $region17: #{tpu_custom_call.1} parent=1 // pred_fallthru
      _
    // Predicated region
    $region18: #{tpu_custom_call.1} parent=1 // pred_check
      _
    $region19: #{tpu_custom_call.1} parent=1 // pred_check_branch
      %32 = sbr.rel (0) target = $region21
    $region20: #{tpu_custom_call.1} parent=1 // pred_region
      _
    $region21: #{tpu_custom_call.1} parent=1 // pred_fallthru
      _
    // Predicated region
    $region22: #{tpu_custom_call.1} parent=1 // pred_check
      _
    $region23: #{tpu_custom_call.1} parent=1 // pred_check_branch
      %34 = sbr.rel (0) target = $region25
    $region24: #{tpu_custom_call.1} parent=1 // pred_region
      _
    $region25: #{tpu_custom_call.1} parent=1 // pred_fallthru
      _
    // Predicated region
    $region26: #{tpu_custom_call.1} parent=1 // pred_check
      _
    $region27: #{tpu_custom_call.1} parent=1 // pred_check_branch
      %36 = sbr.rel (0) target = $region29
    $region28: #{tpu_custom_call.1} parent=1 // pred_region
      %38 = vsyncadd [#allocation3], 0
      %s39 = sshll.u32 %s6, 4
      %s40 = int_to_ptr.hbm [resolvable:$true] %s39
      %s41 = sshll.u32 [#allocation2], 4
      %s42 = int_to_ptr.vmem [resolvable:$true] %s41
      %47 = dma.hbm_to_vmem [thread:$0]  %s40, 1536, %s42, [#allocation3], 128, 128, 8
    $region29: #{tpu_custom_call.1} parent=1 // pred_fallthru
      _
    // Predicated region
    $region30: #{tpu_custom_call.1} parent=1 // pred_check
      _
    $region31: #{tpu_custom_call.1} parent=1 // pred_check_branch
      %49 = sbr.rel (0) target = $region33
    $region32: #{tpu_custom_call.1} parent=1 // pred_region
      _
    $region33: #{tpu_custom_call.1} parent=1 // pred_fallthru
      _
    // Predicated region
    $region34: #{tpu_custom_call.1} parent=1 // pred_check
      _
    $region35: #{tpu_custom_call.1} parent=1 // pred_check_branch
      %51 = sbr.rel (0) target = $region37
    $region36: #{tpu_custom_call.1} parent=1 // pred_region
      %53 = vsyncadd [#allocation6], 0
      %s54 = sshll.u32 %s8, 4
      %s55 = int_to_ptr.hbm [resolvable:$true] %s54
      %s56 = sshll.u32 [#allocation5], 4
      %s57 = int_to_ptr.vmem [resolvable:$true] %s56
      %62 = dma.hbm_to_vmem [thread:$0]  %s55, 4608, %s57, [#allocation6], 384, 384, 24
    $region37: #{tpu_custom_call.1} parent=1 // pred_fallthru
      _
    // Predicated region
    $region38: #{tpu_custom_call.1} parent=1 // pred_check
      _
    $region39: #{tpu_custom_call.1} parent=1 // pred_check_branch
      %64 = sbr.rel (0) target = $region41
    $region40: #{tpu_custom_call.1} parent=1 // pred_region
      _
    $region41: #{tpu_custom_call.1} parent=1 // pred_fallthru
      _
    // Predicated region
    $region42: #{tpu_custom_call.1} parent=1 // pred_check
      _
    $region43: #{tpu_custom_call.1} parent=1 // pred_check_branch
      %66 = sbr.rel (0) target = $region45
    $region44: #{tpu_custom_call.1} parent=1 // pred_region
      %68 = dma.done [#allocation3], 1536
    $region45: #{tpu_custom_call.1} parent=1 // pred_fallthru
      _
    // Predicated region
    $region46: #{tpu_custom_call.1} parent=1 // pred_check
      _
    $region47: #{tpu_custom_call.1} parent=1 // pred_check_branch
      %70 = sbr.rel (0) target = $region49
    $region48: #{tpu_custom_call.1} parent=1 // pred_region
      %72 = dma.done [#allocation6], 4608
    $region49: #{tpu_custom_call.1} parent=1 // pred_fallthru
      _
    %v73 = vld [vmem:[%s0] sm:$0xff]
    %v74 = vld [vmem:[%s0 + $0x8] sm:$0xff]
    %v75 = vld [vmem:[%s1] sm:$0x3]
    %v76 = vld [vmem:[%s1 + $0x2] sm:$0x3]
    %v77 = vld [vmem:[%s2] sm:$0x3]
    %v78 = vld [vmem:[%s3] sm:$0x3]
    %v79 = vld [vmem:[%s4] sm:$0x3]
    %81 = vset.pattern.permute.xlu0 0
    %82 = vperm.xlu0 %81, %v73
    %v83 = vpop.permute.xlu0 %82
    %86 = vset.pattern.permute.xlu0 0
    %87 = vperm.xlu0 %86, %v74
    %v88 = vpop.permute.xlu0 %87
    %v90 = vperm.slane %v79, 0
    %v91 = vmul.f32 %v83, %v90
    %v92 = vmul.f32 %v88, %v90
    %93 = vset.pattern.permute.xlu0 1
    %94 = vperm.xlu0 %93, %v73
    %v95 = vpop.permute.xlu0 %94
    %97 = vset.pattern.permute.xlu0 1
    %98 = vperm.xlu0 %97, %v74
    %v99 = vpop.permute.xlu0 %98
    %v101 = vperm.slane %v79, 1
    %v102 = vmul.f32 %v95, %v101
    %v103 = vmul.f32 %v99, %v101
    %v104 = vadd.f32 %v91, %v102
    %v105 = vadd.f32 %v92, %v103
    %v106 = vld [vmem:[%s5] sm:$0x1]
    %v108 = vperm.slane %v106, 0
    %v110 = vadd.f32 %v104, %v108
    %v111 = vadd.f32 %v105, %v108
    %v112 = vand.u32 2147483647, %v110
    %vm113 = vcmp.le.f32.partialorder %v112, 0.7853982
    %vm114 = vcmp.lt.s32.totalorder %v110, 0
    %v115 = vand.u32 %v110, 2139095040
    %v116 = vshrl.u32 %v115, 23
    %v117 = vsub.s32 %v116, 127
    %v118 = vand.u32 2147483647, %v110
    %v119 = vand.u32 %v118, 8388607
    %v120 = vor.u32 %v119, 8388608
    %v121 = vsub.s32 0, %v120
    %v122 = vadd.s32 %v117, 1
    %vm123 = vcmp.gt.s32.totalorder %v122, 0
    %v124 = vsel %vm123, %v122, 0
    %v125 = vshrl.u32 %v124, 5
    %v126 = vand.u32 %v124, 31
    %v127 = vsub.s32 32, %v126
    %v128 = vshrl.u32 683565275, %v127
    %v129 = vshll.u32 683565275, %v126
    %v130 = vshrl.u32 2475754826, %v127
    %v131 = vor.u32 %v129, %v130
    %v132 = vshll.u32 2475754826, %v126
    %v133 = vshrl.u32 2131351028, %v127
    %v134 = vor.u32 %v132, %v133
    %v135 = vshll.u32 2131351028, %v126
    %v136 = vshrl.u32 2102212464, %v127
    %v137 = vor.u32 %v135, %v136
    %v138 = vshll.u32 2102212464, %v126
    %v139 = vshrl.u32 920167782, %v127
    %v140 = vor.u32 %v138, %v139
    %v141 = vshll.u32 920167782, %v126
    %v142 = vshrl.u32 1326507024, %v127
    %v143 = vor.u32 %v141, %v142
    %vm144 = vcmp.lt.s32.totalorder %v125, 1
    %vm145 = vcmp.lt.s32.totalorder %v125, 2
    %vm146 = vcmp.lt.s32.totalorder %v125, 3
    %vm147 = vcmp.lt.s32.totalorder %v125, 4
    %v148 = vsel %vm144, %v128, %v131
    %v149 = vsel %vm147, %v137, 2102212464
    %v150 = vsel %vm146, %v134, %v149
    %v151 = vsel %vm145, %v148, %v150
    %v152 = vsel %vm144, %v131, %v134
    %v153 = vsel %vm147, %v140, 920167782
    %v154 = vsel %vm146, %v137, %v153
    %v155 = vsel %vm145, %v152, %v154
    %v156 = vsel %vm144, %v134, %v137
    %v157 = vsel %vm147, %v143, 1326507024
    %v158 = vsel %vm146, %v140, %v157
    %v159 = vsel %vm145, %v156, %v158
    %v160 = vshll.u32 %v120, 8
    %v161 = vand.u32 %v160, 65535
    %v162 = vshrl.u32 %v160, 16
    %v163 = vand.u32 %v159, 65535
    %v164 = vshrl.u32 %v159, 16
    %v165 = vmul.u32 %v161, %v163
    %v166 = vmul.u32 %v161, %v164
    %v167 = vmul.u32 %v162, %v163
    %v168 = vmul.u32 %v162, %v164
    %v169 = vshll.u32 %v166, 16
    %v170 = vshrl.u32 %v166, 16
    %v171 = vshll.u32 %v167, 16
    %v172 = vshrl.u32 %v167, 16
    %vm173 = vc.u32 %v165, %v169
    %v174 = vsel %vm173, 1, 0
    %v175 = vadd.s32 %v165, %v169
    %v176 = vadd.s32 %v168, %v174
    %vm177 = vc.u32 %v175, %v171
    %v178 = vsel %vm177, 1, 0
    %v179 = vadd.s32 %v175, %v171
    %v180 = vadd.s32 %v176, %v178
    %v181 = vadd.s32 %v180, %v170
    %v182 = vadd.s32 %v181, %v172
    %v183 = vand.u32 %v160, 65535
    %v184 = vshrl.u32 %v160, 16
    %v185 = vand.u32 %v155, 65535
    %v186 = vshrl.u32 %v155, 16
    %v187 = vmul.u32 %v183, %v185
    %v188 = vmul.u32 %v183, %v186
    %v189 = vmul.u32 %v184, %v185
    %v190 = vmul.u32 %v184, %v186
    %v191 = vshll.u32 %v188, 16
    %v192 = vshrl.u32 %v188, 16
    %v193 = vshll.u32 %v189, 16
    %v194 = vshrl.u32 %v189, 16
    %vm195 = vc.u32 %v187, %v191
    %v196 = vsel %vm195, 1, 0
    %v197 = vadd.s32 %v187, %v191
    %v198 = vadd.s32 %v190, %v196
    %vm199 = vc.u32 %v197, %v193
    %v200 = vsel %vm199, 1, 0
    %v201 = vadd.s32 %v197, %v193
    %v202 = vadd.s32 %v198, %v200
    %v203 = vadd.s32 %v202, %v192
    %v204 = vadd.s32 %v203, %v194
    %v205 = vmul.u32 %v160, %v151
    %v206 = vadd.s32 %v182, %v201
    %vm207 = vc.u32 %v182, %v201
    %v208 = vadd.s32 %v204, 1
    %v209 = vsel %vm207, %v208, %v204
    %v210 = vadd.s32 %v205, %v209
    %v211 = vadd.s32 %v210, 536870912
    %v212 = vshrl.u32 %v211, 30
    %v213 = vshll.u32 %v212, 30
    %v214 = vsub.s32 %v210, %v213
    %vm215 = vcmp.lt.s32.totalorder %v214, 0
    %v216 = vsub.s32 0, %v214
    %v217 = vsel %vm215, %v216, %v214
    %v218 = vclz %v217
    %v219 = vsub.s32 %v218, 2
    %vm220 = vcmp.gt.s32.totalorder 0, %v219
    %v221 = vsel %vm220, 0, %v219
    %v222 = vsub.s32 32, %v221
    %v223 = vshll.u32 %v214, %v221
    %v224 = vshrl.u32 %v206, %v222
    %v225 = vor.u32 %v223, %v224
    %v226 = vsub.s32 4294967266, %v221
    %v227 = vadd.s32 %v226, 127
    %v228 = vshll.u32 %v227, 23
    %v229 = vor.u32 4788187, %v228
    %v230 = vand.u32 2147483647, %v229
    %v232 = vcvt.s32.f32 %v225
    %v233 = vmul.f32 %v232, %v230
    %v234 = vxor.u32 %v233, 2147483648
    %v235 = vsel %vm114, %v234, %v233
    %v236 = vsub.s32 4, %v212
    %v237 = vsel %vm114, %v236, %v212
    %v238 = vsel %vm113, %v110, %v235
    %v239 = vsel %vm113, 0, %v237
    %v240 = vmul.f32 %v238, %v238
    %v241 = vmul.f32 %v240, -0.001358992
    %v242 = vadd.f32 %v241, 0.041655596
    %v243 = vmul.f32 %v240, %v242
    %v244 = vadd.f32 %v243, -0.4999988
    %v245 = vmul.f32 %v240, %v244
    %v246 = vadd.f32 1.0, %v245
    %v247 = vmul.f32 %v238, %v238
    %v248 = vmul.f32 %v247, -0.00019511016
    %v249 = vadd.f32 %v248, 0.008332121
    %v250 = vmul.f32 %v247, %v249
    %v251 = vadd.f32 %v250, -0.16666654
    %v252 = vmul.f32 %v247, %v251
    %v253 = vadd.f32 %v252, 1.0
    %v254 = vmul.f32 %v253, %v238
    %vm255 = vweird.f32 %v110
    %v256 = vadd.s32 %v239, 3
    %v257 = vand.u32 %v256, 3
    %vm258 = vcmp.lt.s32.totalorder %v257, 2
    %vm259 = vcmp.eq.s32.totalorder %v257, 0
    %v260 = vxor.u32 %v254, 2147483648
    %v261 = vsel %vm259, %v246, %v260
    %vm262 = vcmp.eq.s32.totalorder %v257, 2
    %v263 = vxor.u32 %v246, 2147483648
    %v264 = vsel %vm262, %v263, %v254
    %v265 = vsel %vm258, %v261, %v264
    %v266 = vsel %vm255, nan, %v265
    %v267 = vand.u32 2147483647, %v111
    %vm268 = vcmp.le.f32.partialorder %v267, 0.7853982
    %vm269 = vcmp.lt.s32.totalorder %v111, 0
    %v270 = vand.u32 %v111, 2139095040
    %v271 = vshrl.u32 %v270, 23
    %v272 = vsub.s32 %v271, 127
    %v273 = vand.u32 2147483647, %v111
    %v274 = vand.u32 %v273, 8388607
    %v275 = vor.u32 %v274, 8388608
    %v276 = vsub.s32 0, %v275
    %v277 = vadd.s32 %v272, 1
    %vm278 = vcmp.gt.s32.totalorder %v277, 0
    %v279 = vsel %vm278, %v277, 0
    %v280 = vshrl.u32 %v279, 5
    %v281 = vand.u32 %v279, 31
    %v282 = vsub.s32 32, %v281
    %v283 = vshrl.u32 683565275, %v282
    %v284 = vshll.u32 683565275, %v281
    %v285 = vshrl.u32 2475754826, %v282
    %v286 = vor.u32 %v284, %v285
    %v287 = vshll.u32 2475754826, %v281
    %v288 = vshrl.u32 2131351028, %v282
    %v289 = vor.u32 %v287, %v288
    %v290 = vshll.u32 2131351028, %v281
    %v291 = vshrl.u32 2102212464, %v282
    %v292 = vor.u32 %v290, %v291
    %v293 = vshll.u32 2102212464, %v281
    %v294 = vshrl.u32 920167782, %v282
    %v295 = vor.u32 %v293, %v294
    %v296 = vshll.u32 920167782, %v281
    %v297 = vshrl.u32 1326507024, %v282
    %v298 = vor.u32 %v296, %v297
    %vm299 = vcmp.lt.s32.totalorder %v280, 1
    %vm300 = vcmp.lt.s32.totalorder %v280, 2
    %vm301 = vcmp.lt.s32.totalorder %v280, 3
    %vm302 = vcmp.lt.s32.totalorder %v280, 4
    %v303 = vsel %vm299, %v283, %v286
    %v304 = vsel %vm302, %v292, 2102212464
    %v305 = vsel %vm301, %v289, %v304
    %v306 = vsel %vm300, %v303, %v305
    %v307 = vsel %vm299, %v286, %v289
    %v308 = vsel %vm302, %v295, 920167782
    %v309 = vsel %vm301, %v292, %v308
    %v310 = vsel %vm300, %v307, %v309
    %v311 = vsel %vm299, %v289, %v292
    %v312 = vsel %vm302, %v298, 1326507024
    %v313 = vsel %vm301, %v295, %v312
    %v314 = vsel %vm300, %v311, %v313
    %v315 = vshll.u32 %v275, 8
    %v316 = vand.u32 %v315, 65535
    %v317 = vshrl.u32 %v315, 16
    %v318 = vand.u32 %v314, 65535
    %v319 = vshrl.u32 %v314, 16
    %v320 = vmul.u32 %v316, %v318
    %v321 = vmul.u32 %v316, %v319
    %v322 = vmul.u32 %v317, %v318
    %v323 = vmul.u32 %v317, %v319
    %v324 = vshll.u32 %v321, 16
    %v325 = vshrl.u32 %v321, 16
    %v326 = vshll.u32 %v322, 16
    %v327 = vshrl.u32 %v322, 16
    %vm328 = vc.u32 %v320, %v324
    %v329 = vsel %vm328, 1, 0
    %v330 = vadd.s32 %v320, %v324
    %v331 = vadd.s32 %v323, %v329
    %vm332 = vc.u32 %v330, %v326
    %v333 = vsel %vm332, 1, 0
    %v334 = vadd.s32 %v330, %v326
    %v335 = vadd.s32 %v331, %v333
    %v336 = vadd.s32 %v335, %v325
    %v337 = vadd.s32 %v336, %v327
    %v338 = vand.u32 %v315, 65535
    %v339 = vshrl.u32 %v315, 16
    %v340 = vand.u32 %v310, 65535
    %v341 = vshrl.u32 %v310, 16
    %v342 = vmul.u32 %v338, %v340
    %v343 = vmul.u32 %v338, %v341
    %v344 = vmul.u32 %v339, %v340
    %v345 = vmul.u32 %v339, %v341
    %v346 = vshll.u32 %v343, 16
    %v347 = vshrl.u32 %v343, 16
    %v348 = vshll.u32 %v344, 16
    %v349 = vshrl.u32 %v344, 16
    %vm350 = vc.u32 %v342, %v346
    %v351 = vsel %vm350, 1, 0
    %v352 = vadd.s32 %v342, %v346
    %v353 = vadd.s32 %v345, %v351
    %vm354 = vc.u32 %v352, %v348
    %v355 = vsel %vm354, 1, 0
    %v356 = vadd.s32 %v352, %v348
    %v357 = vadd.s32 %v353, %v355
    %v358 = vadd.s32 %v357, %v347
    %v359 = vadd.s32 %v358, %v349
    %v360 = vmul.u32 %v315, %v306
    %v361 = vadd.s32 %v337, %v356
    %vm362 = vc.u32 %v337, %v356
    %v363 = vadd.s32 %v359, 1
    %v364 = vsel %vm362, %v363, %v359
    %v365 = vadd.s32 %v360, %v364
    %v366 = vadd.s32 %v365, 536870912
    %v367 = vshrl.u32 %v366, 30
    %v368 = vshll.u32 %v367, 30
    %v369 = vsub.s32 %v365, %v368
    %vm370 = vcmp.lt.s32.totalorder %v369, 0
    %v371 = vsub.s32 0, %v369
    %v372 = vsel %vm370, %v371, %v369
    %v373 = vclz %v372
    %v374 = vsub.s32 %v373, 2
    %vm375 = vcmp.gt.s32.totalorder 0, %v374
    %v376 = vsel %vm375, 0, %v374
    %v377 = vsub.s32 32, %v376
    %v378 = vshll.u32 %v369, %v376
    %v379 = vshrl.u32 %v361, %v377
    %v380 = vor.u32 %v378, %v379
    %v381 = vsub.s32 4294967266, %v376
    %v382 = vadd.s32 %v381, 127
    %v383 = vshll.u32 %v382, 23
    %v384 = vor.u32 4788187, %v383
    %v385 = vand.u32 2147483647, %v384
    %v387 = vcvt.s32.f32 %v380
    %v388 = vmul.f32 %v387, %v385
    %v389 = vxor.u32 %v388, 2147483648
    %v390 = vsel %vm269, %v389, %v388
    %v391 = vsub.s32 4, %v367
    %v392 = vsel %vm269, %v391, %v367
    %v393 = vsel %vm268, %v111, %v390
    %v394 = vsel %vm268, 0, %v392
    %v395 = vmul.f32 %v393, %v393
    %v396 = vmul.f32 %v395, -0.001358992
    %v397 = vadd.f32 %v396, 0.041655596
    %v398 = vmul.f32 %v395, %v397
    %v399 = vadd.f32 %v398, -0.4999988
    %v400 = vmul.f32 %v395, %v399
    %v401 = vadd.f32 1.0, %v400
    %v402 = vmul.f32 %v393, %v393
    %v403 = vmul.f32 %v402, -0.00019511016
    %v404 = vadd.f32 %v403, 0.008332121
    %v405 = vmul.f32 %v402, %v404
    %v406 = vadd.f32 %v405, -0.16666654
    %v407 = vmul.f32 %v402, %v406
    %v408 = vadd.f32 %v407, 1.0
    %v409 = vmul.f32 %v408, %v393
    %vm410 = vweird.f32 %v111
    %v411 = vadd.s32 %v394, 3
    %v412 = vand.u32 %v411, 3
    %vm413 = vcmp.lt.s32.totalorder %v412, 2
    %vm414 = vcmp.eq.s32.totalorder %v412, 0
    %v415 = vxor.u32 %v409, 2147483648
    %v416 = vsel %vm414, %v401, %v415
    %vm417 = vcmp.eq.s32.totalorder %v412, 2
    %v418 = vxor.u32 %v401, 2147483648
    %v419 = vsel %vm417, %v418, %v409
    %v420 = vsel %vm413, %v416, %v419
    %v421 = vsel %vm410, nan, %v420
    %v422 = vld [vmem:[#allocation2] sm:$0xff]
    %v423 = vld [vmem:[#allocation2 + $0x8] sm:$0xff]
    %v424 = vld [vmem:[#allocation2 + $0x10] sm:$0xff]
    %v425 = vld [vmem:[#allocation2 + $0x18] sm:$0xff]
    %v426 = vld [vmem:[#allocation2 + $0x20] sm:$0xff]
    %v427 = vld [vmem:[#allocation2 + $0x28] sm:$0xff]
    %v428 = vld [vmem:[#allocation2 + $0x30] sm:$0xff]
    %v429 = vld [vmem:[#allocation2 + $0x38] sm:$0xff]
    %v430 = vld [vmem:[#allocation2 + $0x40] sm:$0xff]
    %v431 = vld [vmem:[#allocation2 + $0x48] sm:$0xff]
    %v432 = vld [vmem:[#allocation2 + $0x50] sm:$0xff]
    %v433 = vld [vmem:[#allocation2 + $0x58] sm:$0xff]
    %v434 = vld [vmem:[%s7] sm:$0x1]
    %v436 = vperm.slane %v434, 0
    %vm438 = vcmask 785408
    %v440 = vsel %vm438, %v266, 0
    %v443 = vsel %vm438, %v421, 0
    %445 = vmatpush.msra.mxu0 0.0
    %446 = vmatpush.msra.mxu0 0.0
    %447 = vmatpush.msra.mxu0 0.0
    %448 = vmatpush.msra.mxu0 0.0
    %449 = vmatpush.msra.mxu0 %v433
    %450 = vmatpush.msra.mxu0 %v432
    %451 = vmatpush.msra.mxu0 %v431
    %452 = vmatpush.msra.mxu0 %v430
    %453 = vmatpush.msra.mxu0 %v429
    %454 = vmatpush.msra.mxu0 %v428
    %455 = vmatpush.msra.mxu0 %v427
    %456 = vmatpush.msra.mxu0 %v426
    %457 = vmatpush.msra.mxu0 %v425
    %458 = vmatpush.msra.mxu0 %v424
    %459 = vmatpush.msra.mxu0 %v423
    %460 = vmatpush.msra.mxu0 %v422
    %461 = vmatmul.f32.gmra.mxu0 %v440
    %v462 = vpop.f32.mrf.mxu0
    %v463 = vadd.f32 %v436, %v462
    %464 = vmatmul.f32.gmra.mxu0 %v443
    %v465 = vpop.f32.mrf.mxu0
    %v466 = vadd.f32 %v436, %v465
    %467 = vdwg.mxu0
    %v468 = vand.u32 2147483647, %v463
    %vm469 = vcmp.le.f32.partialorder %v468, 0.7853982
    %vm470 = vcmp.lt.s32.totalorder %v463, 0
    %v471 = vand.u32 %v463, 2139095040
    %v472 = vshrl.u32 %v471, 23
    %v473 = vsub.s32 %v472, 127
    %v474 = vand.u32 2147483647, %v463
    %v475 = vand.u32 %v474, 8388607
    %v476 = vor.u32 %v475, 8388608
    %v477 = vsub.s32 0, %v476
    %v478 = vadd.s32 %v473, 1
    %vm479 = vcmp.gt.s32.totalorder %v478, 0
    %v480 = vsel %vm479, %v478, 0
    %v481 = vshrl.u32 %v480, 5
    %v482 = vand.u32 %v480, 31
    %v483 = vsub.s32 32, %v482
    %v484 = vshrl.u32 683565275, %v483
    %v485 = vshll.u32 683565275, %v482
    %v486 = vshrl.u32 2475754826, %v483
    %v487 = vor.u32 %v485, %v486
    %v488 = vshll.u32 2475754826, %v482
    %v489 = vshrl.u32 2131351028, %v483
    %v490 = vor.u32 %v488, %v489
    %v491 = vshll.u32 2131351028, %v482
    %v492 = vshrl.u32 2102212464, %v483
    %v493 = vor.u32 %v491, %v492
    %v494 = vshll.u32 2102212464, %v482
    %v495 = vshrl.u32 920167782, %v483
    %v496 = vor.u32 %v494, %v495
    %v497 = vshll.u32 920167782, %v482
    %v498 = vshrl.u32 1326507024, %v483
    %v499 = vor.u32 %v497, %v498
    %vm500 = vcmp.lt.s32.totalorder %v481, 1
    %vm501 = vcmp.lt.s32.totalorder %v481, 2
    %vm502 = vcmp.lt.s32.totalorder %v481, 3
    %vm503 = vcmp.lt.s32.totalorder %v481, 4
    %v504 = vsel %vm500, %v484, %v487
    %v505 = vsel %vm503, %v493, 2102212464
    %v506 = vsel %vm502, %v490, %v505
    %v507 = vsel %vm501, %v504, %v506
    %v508 = vsel %vm500, %v487, %v490
    %v509 = vsel %vm503, %v496, 920167782
    %v510 = vsel %vm502, %v493, %v509
    %v511 = vsel %vm501, %v508, %v510
    %v512 = vsel %vm500, %v490, %v493
    %v513 = vsel %vm503, %v499, 1326507024
    %v514 = vsel %vm502, %v496, %v513
    %v515 = vsel %vm501, %v512, %v514
    %v516 = vshll.u32 %v476, 8
    %v517 = vand.u32 %v516, 65535
    %v518 = vshrl.u32 %v516, 16
    %v519 = vand.u32 %v515, 65535
    %v520 = vshrl.u32 %v515, 16
    %v521 = vmul.u32 %v517, %v519
    %v522 = vmul.u32 %v517, %v520
    %v523 = vmul.u32 %v518, %v519
    %v524 = vmul.u32 %v518, %v520
    %v525 = vshll.u32 %v522, 16
    %v526 = vshrl.u32 %v522, 16
    %v527 = vshll.u32 %v523, 16
    %v528 = vshrl.u32 %v523, 16
    %vm529 = vc.u32 %v521, %v525
    %v530 = vsel %vm529, 1, 0
    %v531 = vadd.s32 %v521, %v525
    %v532 = vadd.s32 %v524, %v530
    %vm533 = vc.u32 %v531, %v527
    %v534 = vsel %vm533, 1, 0
    %v535 = vadd.s32 %v531, %v527
    %v536 = vadd.s32 %v532, %v534
    %v537 = vadd.s32 %v536, %v526
    %v538 = vadd.s32 %v537, %v528
    %v539 = vand.u32 %v516, 65535
    %v540 = vshrl.u32 %v516, 16
    %v541 = vand.u32 %v511, 65535
    %v542 = vshrl.u32 %v511, 16
    %v543 = vmul.u32 %v539, %v541
    %v544 = vmul.u32 %v539, %v542
    %v545 = vmul.u32 %v540, %v541
    %v546 = vmul.u32 %v540, %v542
    %v547 = vshll.u32 %v544, 16
    %v548 = vshrl.u32 %v544, 16
    %v549 = vshll.u32 %v545, 16
    %v550 = vshrl.u32 %v545, 16
    %vm551 = vc.u32 %v543, %v547
    %v552 = vsel %vm551, 1, 0
    %v553 = vadd.s32 %v543, %v547
    %v554 = vadd.s32 %v546, %v552
    %vm555 = vc.u32 %v553, %v549
    %v556 = vsel %vm555, 1, 0
    %v557 = vadd.s32 %v553, %v549
    %v558 = vadd.s32 %v554, %v556
    %v559 = vadd.s32 %v558, %v548
    %v560 = vadd.s32 %v559, %v550
    %v561 = vmul.u32 %v516, %v507
    %v562 = vadd.s32 %v538, %v557
    %vm563 = vc.u32 %v538, %v557
    %v564 = vadd.s32 %v560, 1
    %v565 = vsel %vm563, %v564, %v560
    %v566 = vadd.s32 %v561, %v565
    %v567 = vadd.s32 %v566, 536870912
    %v568 = vshrl.u32 %v567, 30
    %v569 = vshll.u32 %v568, 30
    %v570 = vsub.s32 %v566, %v569
    %vm571 = vcmp.lt.s32.totalorder %v570, 0
    %v572 = vsub.s32 0, %v570
    %v573 = vsel %vm571, %v572, %v570
    %v574 = vclz %v573
    %v575 = vsub.s32 %v574, 2
    %vm576 = vcmp.gt.s32.totalorder 0, %v575
    %v577 = vsel %vm576, 0, %v575
    %v578 = vsub.s32 32, %v577
    %v579 = vshll.u32 %v570, %v577
    %v580 = vshrl.u32 %v562, %v578
    %v581 = vor.u32 %v579, %v580
    %v582 = vsub.s32 4294967266, %v577
    %v583 = vadd.s32 %v582, 127
    %v584 = vshll.u32 %v583, 23
    %v585 = vor.u32 4788187, %v584
    %v586 = vand.u32 2147483647, %v585
    %v588 = vcvt.s32.f32 %v581
    %v589 = vmul.f32 %v588, %v586
    %v590 = vxor.u32 %v589, 2147483648
    %v591 = vsel %vm470, %v590, %v589
    %v592 = vsub.s32 4, %v568
    %v593 = vsel %vm470, %v592, %v568
    %v594 = vsel %vm469, %v463, %v591
    %v595 = vsel %vm469, 0, %v593
    %v596 = vmul.f32 %v594, %v594
    %v597 = vmul.f32 %v596, -0.001358992
    %v598 = vadd.f32 %v597, 0.041655596
    %v599 = vmul.f32 %v596, %v598
    %v600 = vadd.f32 %v599, -0.4999988
    %v601 = vmul.f32 %v596, %v600
    %v602 = vadd.f32 1.0, %v601
    %v603 = vmul.f32 %v594, %v594
    %v604 = vmul.f32 %v603, -0.00019511016
    %v605 = vadd.f32 %v604, 0.008332121
    %v606 = vmul.f32 %v603, %v605
    %v607 = vadd.f32 %v606, -0.16666654
    %v608 = vmul.f32 %v603, %v607
    %v609 = vadd.f32 %v608, 1.0
    %v610 = vmul.f32 %v609, %v594
    %vm611 = vweird.f32 %v463
    %v612 = vadd.s32 %v595, 3
    %v613 = vand.u32 %v612, 3
    %vm614 = vcmp.lt.s32.totalorder %v613, 2
    %vm615 = vcmp.eq.s32.totalorder %v613, 0
    %v616 = vxor.u32 %v610, 2147483648
    %v617 = vsel %vm615, %v602, %v616
    %vm618 = vcmp.eq.s32.totalorder %v613, 2
    %v619 = vxor.u32 %v602, 2147483648
    %v620 = vsel %vm618, %v619, %v610
    %v621 = vsel %vm614, %v617, %v620
    %v622 = vsel %vm611, nan, %v621
    %v623 = vand.u32 2147483647, %v466
    %vm624 = vcmp.le.f32.partialorder %v623, 0.7853982
    %vm625 = vcmp.lt.s32.totalorder %v466, 0
    %v626 = vand.u32 %v466, 2139095040
    %v627 = vshrl.u32 %v626, 23
    %v628 = vsub.s32 %v627, 127
    %v629 = vand.u32 2147483647, %v466
    %v630 = vand.u32 %v629, 8388607
    %v631 = vor.u32 %v630, 8388608
    %v632 = vsub.s32 0, %v631
    %v633 = vadd.s32 %v628, 1
    %vm634 = vcmp.gt.s32.totalorder %v633, 0
    %v635 = vsel %vm634, %v633, 0
    %v636 = vshrl.u32 %v635, 5
    %v637 = vand.u32 %v635, 31
    %v638 = vsub.s32 32, %v637
    %v639 = vshrl.u32 683565275, %v638
    %v640 = vshll.u32 683565275, %v637
    %v641 = vshrl.u32 2475754826, %v638
    %v642 = vor.u32 %v640, %v641
    %v643 = vshll.u32 2475754826, %v637
    %v644 = vshrl.u32 2131351028, %v638
    %v645 = vor.u32 %v643, %v644
    %v646 = vshll.u32 2131351028, %v637
    %v647 = vshrl.u32 2102212464, %v638
    %v648 = vor.u32 %v646, %v647
    %v649 = vshll.u32 2102212464, %v637
    %v650 = vshrl.u32 920167782, %v638
    %v651 = vor.u32 %v649, %v650
    %v652 = vshll.u32 920167782, %v637
    %v653 = vshrl.u32 1326507024, %v638
    %v654 = vor.u32 %v652, %v653
    %vm655 = vcmp.lt.s32.totalorder %v636, 1
    %vm656 = vcmp.lt.s32.totalorder %v636, 2
    %vm657 = vcmp.lt.s32.totalorder %v636, 3
    %vm658 = vcmp.lt.s32.totalorder %v636, 4
    %v659 = vsel %vm655, %v639, %v642
    %v660 = vsel %vm658, %v648, 2102212464
    %v661 = vsel %vm657, %v645, %v660
    %v662 = vsel %vm656, %v659, %v661
    %v663 = vsel %vm655, %v642, %v645
    %v664 = vsel %vm658, %v651, 920167782
    %v665 = vsel %vm657, %v648, %v664
    %v666 = vsel %vm656, %v663, %v665
    %v667 = vsel %vm655, %v645, %v648
    %v668 = vsel %vm658, %v654, 1326507024
    %v669 = vsel %vm657, %v651, %v668
    %v670 = vsel %vm656, %v667, %v669
    %v671 = vshll.u32 %v631, 8
    %v672 = vand.u32 %v671, 65535
    %v673 = vshrl.u32 %v671, 16
    %v674 = vand.u32 %v670, 65535
    %v675 = vshrl.u32 %v670, 16
    %v676 = vmul.u32 %v672, %v674
    %v677 = vmul.u32 %v672, %v675
    %v678 = vmul.u32 %v673, %v674
    %v679 = vmul.u32 %v673, %v675
    %v680 = vshll.u32 %v677, 16
    %v681 = vshrl.u32 %v677, 16
    %v682 = vshll.u32 %v678, 16
    %v683 = vshrl.u32 %v678, 16
    %vm684 = vc.u32 %v676, %v680
    %v685 = vsel %vm684, 1, 0
    %v686 = vadd.s32 %v676, %v680
    %v687 = vadd.s32 %v679, %v685
    %vm688 = vc.u32 %v686, %v682
    %v689 = vsel %vm688, 1, 0
    %v690 = vadd.s32 %v686, %v682
    %v691 = vadd.s32 %v687, %v689
    %v692 = vadd.s32 %v691, %v681
    %v693 = vadd.s32 %v692, %v683
    %v694 = vand.u32 %v671, 65535
    %v695 = vshrl.u32 %v671, 16
    %v696 = vand.u32 %v666, 65535
    %v697 = vshrl.u32 %v666, 16
    %v698 = vmul.u32 %v694, %v696
    %v699 = vmul.u32 %v694, %v697
    %v700 = vmul.u32 %v695, %v696
    %v701 = vmul.u32 %v695, %v697
    %v702 = vshll.u32 %v699, 16
    %v703 = vshrl.u32 %v699, 16
    %v704 = vshll.u32 %v700, 16
    %v705 = vshrl.u32 %v700, 16
    %vm706 = vc.u32 %v698, %v702
    %v707 = vsel %vm706, 1, 0
    %v708 = vadd.s32 %v698, %v702
    %v709 = vadd.s32 %v701, %v707
    %vm710 = vc.u32 %v708, %v704
    %v711 = vsel %vm710, 1, 0
    %v712 = vadd.s32 %v708, %v704
    %v713 = vadd.s32 %v709, %v711
    %v714 = vadd.s32 %v713, %v703
    %v715 = vadd.s32 %v714, %v705
    %v716 = vmul.u32 %v671, %v662
    %v717 = vadd.s32 %v693, %v712
    %vm718 = vc.u32 %v693, %v712
    %v719 = vadd.s32 %v715, 1
    %v720 = vsel %vm718, %v719, %v715
    %v721 = vadd.s32 %v716, %v720
    %v722 = vadd.s32 %v721, 536870912
    %v723 = vshrl.u32 %v722, 30
    %v724 = vshll.u32 %v723, 30
    %v725 = vsub.s32 %v721, %v724
    %vm726 = vcmp.lt.s32.totalorder %v725, 0
    %v727 = vsub.s32 0, %v725
    %v728 = vsel %vm726, %v727, %v725
    %v729 = vclz %v728
    %v730 = vsub.s32 %v729, 2
    %vm731 = vcmp.gt.s32.totalorder 0, %v730
    %v732 = vsel %vm731, 0, %v730
    %v733 = vsub.s32 32, %v732
    %v734 = vshll.u32 %v725, %v732
    %v735 = vshrl.u32 %v717, %v733
    %v736 = vor.u32 %v734, %v735
    %v737 = vsub.s32 4294967266, %v732
    %v738 = vadd.s32 %v737, 127
    %v739 = vshll.u32 %v738, 23
    %v740 = vor.u32 4788187, %v739
    %v741 = vand.u32 2147483647, %v740
    %v743 = vcvt.s32.f32 %v736
    %v744 = vmul.f32 %v743, %v741
    %v745 = vxor.u32 %v744, 2147483648
    %v746 = vsel %vm625, %v745, %v744
    %v747 = vsub.s32 4, %v723
    %v748 = vsel %vm625, %v747, %v723
    %v749 = vsel %vm624, %v466, %v746
    %v750 = vsel %vm624, 0, %v748
    %v751 = vmul.f32 %v749, %v749
    %v752 = vmul.f32 %v751, -0.001358992
    %v753 = vadd.f32 %v752, 0.041655596
    %v754 = vmul.f32 %v751, %v753
    %v755 = vadd.f32 %v754, -0.4999988
    %v756 = vmul.f32 %v751, %v755
    %v757 = vadd.f32 1.0, %v756
    %v758 = vmul.f32 %v749, %v749
    %v759 = vmul.f32 %v758, -0.00019511016
    %v760 = vadd.f32 %v759, 0.008332121
    %v761 = vmul.f32 %v758, %v760
    %v762 = vadd.f32 %v761, -0.16666654
    %v763 = vmul.f32 %v758, %v762
    %v764 = vadd.f32 %v763, 1.0
    %v765 = vmul.f32 %v764, %v749
    %vm766 = vweird.f32 %v466
    %v767 = vadd.s32 %v750, 3
    %v768 = vand.u32 %v767, 3
    %vm769 = vcmp.lt.s32.totalorder %v768, 2
    %vm770 = vcmp.eq.s32.totalorder %v768, 0
    %v771 = vxor.u32 %v765, 2147483648
    %v772 = vsel %vm770, %v757, %v771
    %vm773 = vcmp.eq.s32.totalorder %v768, 2
    %v774 = vxor.u32 %v757, 2147483648
    %v775 = vsel %vm773, %v774, %v765
    %v776 = vsel %vm769, %v772, %v775
    %v777 = vsel %vm766, nan, %v776
    %v778 = vld [vmem:[#allocation5] sm:$0xff]
    %v779 = vld [vmem:[#allocation5 + $0x8] sm:$0xff]
    %v780 = vld [vmem:[#allocation5 + $0x10] sm:$0xff]
    %v781 = vld [vmem:[#allocation5 + $0x18] sm:$0xff]
    %v782 = vld [vmem:[#allocation5 + $0x20] sm:$0xff]
    %v783 = vld [vmem:[#allocation5 + $0x28] sm:$0xff]
    %v784 = vld [vmem:[#allocation5 + $0x30] sm:$0xff]
    %v785 = vld [vmem:[#allocation5 + $0x38] sm:$0xff]
    %v786 = vld [vmem:[#allocation5 + $0x40] sm:$0xff]
    %v787 = vld [vmem:[#allocation5 + $0x48] sm:$0xff]
    %v788 = vld [vmem:[#allocation5 + $0x50] sm:$0xff]
    %v789 = vld [vmem:[#allocation5 + $0x58] sm:$0xff]
    %v790 = vld [vmem:[#allocation5 + $0x60] sm:$0xff]
    %v791 = vld [vmem:[#allocation5 + $0x68] sm:$0xff]
    %v792 = vld [vmem:[#allocation5 + $0x70] sm:$0xff]
    %v793 = vld [vmem:[#allocation5 + $0x78] sm:$0xff]
    %v794 = vld [vmem:[#allocation5 + $0x80] sm:$0xff]
    %v795 = vld [vmem:[#allocation5 + $0x88] sm:$0xff]
    %v796 = vld [vmem:[#allocation5 + $0x90] sm:$0xff]
    %v797 = vld [vmem:[#allocation5 + $0x98] sm:$0xff]
    %v798 = vld [vmem:[#allocation5 + $0xa0] sm:$0xff]
    %v799 = vld [vmem:[#allocation5 + $0xa8] sm:$0xff]
    %v800 = vld [vmem:[#allocation5 + $0xb0] sm:$0xff]
    %v801 = vld [vmem:[#allocation5 + $0xb8] sm:$0xff]
    %v802 = vld [vmem:[#allocation5 + $0xc0] sm:$0xff]
    %v803 = vld [vmem:[#allocation5 + $0xc8] sm:$0xff]
    %v804 = vld [vmem:[#allocation5 + $0xd0] sm:$0xff]
    %v805 = vld [vmem:[#allocation5 + $0xd8] sm:$0xff]
    %v806 = vld [vmem:[#allocation5 + $0xe0] sm:$0xff]
    %v807 = vld [vmem:[#allocation5 + $0xe8] sm:$0xff]
    %v808 = vld [vmem:[#allocation5 + $0xf0] sm:$0xff]
    %v809 = vld [vmem:[#allocation5 + $0xf8] sm:$0xff]
    %v810 = vld [vmem:[#allocation5 + $0x100] sm:$0xff]
    %v811 = vld [vmem:[#allocation5 + $0x108] sm:$0xff]
    %v812 = vld [vmem:[#allocation5 + $0x110] sm:$0xff]
    %v813 = vld [vmem:[#allocation5 + $0x118] sm:$0xff]
    %v814 = vld [vmem:[%s9] sm:$0x7]
    %v816 = vperm.slane %v814, 0
    %v817 = vperm.slane %v814, 1
    %v818 = vperm.slane %v814, 2
    %v823 = vsel %vm438, %v622, 0
    %v826 = vsel %vm438, %v777, 0
    %828 = vmatpush.msra.mxu0 0.0
    %829 = vmatpush.msra.mxu0 0.0
    %830 = vmatpush.msra.mxu0 0.0
    %831 = vmatpush.msra.mxu0 0.0
    %832 = vmatpush.msra.mxu0 %v811
    %833 = vmatpush.msra.mxu0 %v808
    %834 = vmatpush.msra.mxu0 %v805
    %835 = vmatpush.msra.mxu0 %v802
    %836 = vmatpush.msra.mxu0 %v799
    %837 = vmatpush.msra.mxu0 %v796
    %838 = vmatpush.msra.mxu0 %v793
    %839 = vmatpush.msra.mxu0 %v790
    %840 = vmatpush.msra.mxu0 %v787
    %841 = vmatpush.msra.mxu0 %v784
    %842 = vmatpush.msra.mxu0 %v781
    %843 = vmatpush.msra.mxu0 %v778
    %844 = vmatmul.f32.gmra.mxu0 %v823
    %v845 = vpop.f32.mrf.mxu0
    %v846 = vadd.f32 %v816, %v845
    %847 = vmatmul.f32.gmra.mxu0 %v826
    %v848 = vpop.f32.mrf.mxu0
    %v849 = vadd.f32 %v816, %v848
    %850 = vdwg.mxu0
    %851 = vmatpush.msra.mxu0 0.0
    %852 = vmatpush.msra.mxu0 0.0
    %853 = vmatpush.msra.mxu0 0.0
    %854 = vmatpush.msra.mxu0 0.0
    %855 = vmatpush.msra.mxu0 %v812
    %856 = vmatpush.msra.mxu0 %v809
    %857 = vmatpush.msra.mxu0 %v806
    %858 = vmatpush.msra.mxu0 %v803
    %859 = vmatpush.msra.mxu0 %v800
    %860 = vmatpush.msra.mxu0 %v797
    %861 = vmatpush.msra.mxu0 %v794
    %862 = vmatpush.msra.mxu0 %v791
    %863 = vmatpush.msra.mxu0 %v788
    %864 = vmatpush.msra.mxu0 %v785
    %865 = vmatpush.msra.mxu0 %v782
    %866 = vmatpush.msra.mxu0 %v779
    %867 = vmatmul.f32.gmra.mxu0 %v823
    %v868 = vpop.f32.mrf.mxu0
    %v869 = vadd.f32 %v817, %v868
    %870 = vmatmul.f32.gmra.mxu0 %v826
    %v871 = vpop.f32.mrf.mxu0
    %v872 = vadd.f32 %v817, %v871
    %873 = vdwg.mxu0
    %874 = vmatpush.msra.mxu0 0.0
    %875 = vmatpush.msra.mxu0 0.0
    %876 = vmatpush.msra.mxu0 0.0
    %877 = vmatpush.msra.mxu0 0.0
    %878 = vmatpush.msra.mxu0 %v813
    %879 = vmatpush.msra.mxu0 %v810
    %880 = vmatpush.msra.mxu0 %v807
    %881 = vmatpush.msra.mxu0 %v804
    %882 = vmatpush.msra.mxu0 %v801
    %883 = vmatpush.msra.mxu0 %v798
    %884 = vmatpush.msra.mxu0 %v795
    %885 = vmatpush.msra.mxu0 %v792
    %886 = vmatpush.msra.mxu0 %v789
    %887 = vmatpush.msra.mxu0 %v786
    %888 = vmatpush.msra.mxu0 %v783
    %889 = vmatpush.msra.mxu0 %v780
    %890 = vmatmul.f32.gmra.mxu0 %v823
    %v891 = vpop.f32.mrf.mxu0
    %v892 = vadd.f32 %v818, %v891
    %893 = vmatmul.f32.gmra.mxu0 %v826
    %v894 = vpop.f32.mrf.mxu0
    %v895 = vadd.f32 %v818, %v894
    %896 = vdwg.mxu0
    %897 = vmax.xlane.f32.xlu0 %v892
    %v898 = vpop.xlane.xlu0 %897
    %899 = vmax.xlane.f32.xlu0 %v895
    %v900 = vpop.xlane.xlu0 %899
    %v901 = vsub.f32 %v892, %v898
    %v902 = vsub.f32 %v895, %v900
    %v903 = vmul.f32 %v901, 1.442695
    %v904 = vpow.pop %v903
    %v905 = vmul.f32 %v902, 1.442695
    %v906 = vpow.pop %v905
    %907 = vadd.xlane.f32.xlu0 %v904
    %v908 = vpop.xlane.xlu0 %907
    %909 = vadd.xlane.f32.xlu0 %v906
    %v910 = vpop.xlane.xlu0 %909
    %v911 = vmul.f32 %v904, 1.5707964
    %v912 = vmul.f32 %v906, 1.5707964
    %v913 = vrcp.pop %v908
    %v914 = vrcp.pop %v910
    %v915 = vmul.f32 %v911, %v913
    %v916 = vmul.f32 %v912, %v914
    %v917 = vperm.slane %v75, 0
    %v918 = vmul.f32 %v83, %v917
    %v919 = vmul.f32 %v88, %v917
    %v920 = vperm.slane %v75, 1
    %v921 = vmul.f32 %v95, %v920
    %v922 = vmul.f32 %v99, %v920
    %v923 = vadd.f32 %v918, %v921
    %v924 = vadd.f32 %v919, %v922
    %927 = vrot.lane.b32.xlu0 %v923, 32
    %v928 = vpop.permute.xlu0 %927
    %929 = vrot.lane.b32.xlu0 %v924, 32
    %v930 = vpop.permute.xlu0 %929
    %933 = vrot.lane.b32.xlu0 %v923, 64
    %v934 = vpop.permute.xlu0 %933
    %935 = vrot.lane.b32.xlu0 %v924, 64
    %v936 = vpop.permute.xlu0 %935
    %939 = vrot.lane.b32.xlu0 %v923, 96
    %v940 = vpop.permute.xlu0 %939
    %941 = vrot.lane.b32.xlu0 %v924, 96
    %v942 = vpop.permute.xlu0 %941
    %vm945 = vcmask 261120
    %v946 = vsel %vm945, %v923, %v928
    %v947 = vsel %vm945, %v924, %v930
    %vm948 = vcmask 523264
    %v949 = vsel %vm948, %v946, %v934
    %v950 = vsel %vm948, %v947, %v936
    %v951 = vsel %vm438, %v949, %v940
    %v952 = vsel %vm438, %v950, %v942
    %v953 = vperm.slane %v77, 0
    %v954 = vmul.f32 %v951, %v953
    %v955 = vmul.f32 %v952, %v953
    %v956 = vperm.slane %v78, 0
    %v957 = vadd.f32 %v954, %v956
    %v958 = vadd.f32 %v955, %v956
    %959 = vmax.xlane.f32.xlu0 %v846
    %v960 = vpop.xlane.xlu0 %959
    %961 = vmax.xlane.f32.xlu0 %v849
    %v962 = vpop.xlane.xlu0 %961
    %v963 = vsub.f32 %v846, %v960
    %v964 = vsub.f32 %v849, %v962
    %v965 = vmul.f32 %v963, 1.442695
    %v966 = vpow.pop %v965
    %v967 = vmul.f32 %v964, 1.442695
    %v968 = vpow.pop %v967
    %969 = vadd.xlane.f32.xlu0 %v966
    %v970 = vpop.xlane.xlu0 %969
    %971 = vadd.xlane.f32.xlu0 %v968
    %v972 = vpop.xlane.xlu0 %971
    %v973 = vmul.f32 %v966, 5.0
    %v974 = vmul.f32 %v968, 5.0
    %v975 = vrcp.pop %v970
    %v976 = vrcp.pop %v972
    %v977 = vmul.f32 %v973, %v975
    %v978 = vmul.f32 %v974, %v976
    %v979 = vadd.f32 %v957, %v915
    %v980 = vadd.f32 %v958, %v916
    %v981 = vand.u32 2147483647, %v979
    %vm982 = vcmp.le.f32.partialorder %v981, 0.7853982
    %vm983 = vcmp.lt.s32.totalorder %v979, 0
    %v984 = vand.u32 %v979, 2139095040
    %v985 = vshrl.u32 %v984, 23
    %v986 = vsub.s32 %v985, 127
    %v987 = vand.u32 2147483647, %v979
    %v988 = vand.u32 %v987, 8388607
    %v989 = vor.u32 %v988, 8388608
    %v990 = vsub.s32 0, %v989
    %v991 = vadd.s32 %v986, 1
    %vm992 = vcmp.gt.s32.totalorder %v991, 0
    %v993 = vsel %vm992, %v991, 0
    %v994 = vshrl.u32 %v993, 5
    %v995 = vand.u32 %v993, 31
    %v996 = vsub.s32 32, %v995
    %v997 = vshrl.u32 683565275, %v996
    %v998 = vshll.u32 683565275, %v995
    %v999 = vshrl.u32 2475754826, %v996
    %v1000 = vor.u32 %v998, %v999
    %v1001 = vshll.u32 2475754826, %v995
    %v1002 = vshrl.u32 2131351028, %v996
    %v1003 = vor.u32 %v1001, %v1002
    %v1004 = vshll.u32 2131351028, %v995
    %v1005 = vshrl.u32 2102212464, %v996
    %v1006 = vor.u32 %v1004, %v1005
    %v1007 = vshll.u32 2102212464, %v995
    %v1008 = vshrl.u32 920167782, %v996
    %v1009 = vor.u32 %v1007, %v1008
    %v1010 = vshll.u32 920167782, %v995
    %v1011 = vshrl.u32 1326507024, %v996
    %v1012 = vor.u32 %v1010, %v1011
    %vm1013 = vcmp.lt.s32.totalorder %v994, 1
    %vm1014 = vcmp.lt.s32.totalorder %v994, 2
    %vm1015 = vcmp.lt.s32.totalorder %v994, 3
    %vm1016 = vcmp.lt.s32.totalorder %v994, 4
    %v1017 = vsel %vm1013, %v997, %v1000
    %v1018 = vsel %vm1016, %v1006, 2102212464
    %v1019 = vsel %vm1015, %v1003, %v1018
    %v1020 = vsel %vm1014, %v1017, %v1019
    %v1021 = vsel %vm1013, %v1000, %v1003
    %v1022 = vsel %vm1016, %v1009, 920167782
    %v1023 = vsel %vm1015, %v1006, %v1022
    %v1024 = vsel %vm1014, %v1021, %v1023
    %v1025 = vsel %vm1013, %v1003, %v1006
    %v1026 = vsel %vm1016, %v1012, 1326507024
    %v1027 = vsel %vm1015, %v1009, %v1026
    %v1028 = vsel %vm1014, %v1025, %v1027
    %v1029 = vshll.u32 %v989, 8
    %v1030 = vand.u32 %v1029, 65535
    %v1031 = vshrl.u32 %v1029, 16
    %v1032 = vand.u32 %v1028, 65535
    %v1033 = vshrl.u32 %v1028, 16
    %v1034 = vmul.u32 %v1030, %v1032
    %v1035 = vmul.u32 %v1030, %v1033
    %v1036 = vmul.u32 %v1031, %v1032
    %v1037 = vmul.u32 %v1031, %v1033
    %v1038 = vshll.u32 %v1035, 16
    %v1039 = vshrl.u32 %v1035, 16
    %v1040 = vshll.u32 %v1036, 16
    %v1041 = vshrl.u32 %v1036, 16
    %vm1042 = vc.u32 %v1034, %v1038
    %v1043 = vsel %vm1042, 1, 0
    %v1044 = vadd.s32 %v1034, %v1038
    %v1045 = vadd.s32 %v1037, %v1043
    %vm1046 = vc.u32 %v1044, %v1040
    %v1047 = vsel %vm1046, 1, 0
    %v1048 = vadd.s32 %v1044, %v1040
    %v1049 = vadd.s32 %v1045, %v1047
    %v1050 = vadd.s32 %v1049, %v1039
    %v1051 = vadd.s32 %v1050, %v1041
    %v1052 = vand.u32 %v1029, 65535
    %v1053 = vshrl.u32 %v1029, 16
    %v1054 = vand.u32 %v1024, 65535
    %v1055 = vshrl.u32 %v1024, 16
    %v1056 = vmul.u32 %v1052, %v1054
    %v1057 = vmul.u32 %v1052, %v1055
    %v1058 = vmul.u32 %v1053, %v1054
    %v1059 = vmul.u32 %v1053, %v1055
    %v1060 = vshll.u32 %v1057, 16
    %v1061 = vshrl.u32 %v1057, 16
    %v1062 = vshll.u32 %v1058, 16
    %v1063 = vshrl.u32 %v1058, 16
    %vm1064 = vc.u32 %v1056, %v1060
    %v1065 = vsel %vm1064, 1, 0
    %v1066 = vadd.s32 %v1056, %v1060
    %v1067 = vadd.s32 %v1059, %v1065
    %vm1068 = vc.u32 %v1066, %v1062
    %v1069 = vsel %vm1068, 1, 0
    %v1070 = vadd.s32 %v1066, %v1062
    %v1071 = vadd.s32 %v1067, %v1069
    %v1072 = vadd.s32 %v1071, %v1061
    %v1073 = vadd.s32 %v1072, %v1063
    %v1074 = vmul.u32 %v1029, %v1020
    %v1075 = vadd.s32 %v1051, %v1070
    %vm1076 = vc.u32 %v1051, %v1070
    %v1077 = vadd.s32 %v1073, 1
    %v1078 = vsel %vm1076, %v1077, %v1073
    %v1079 = vadd.s32 %v1074, %v1078
    %v1080 = vadd.s32 %v1079, 536870912
    %v1081 = vshrl.u32 %v1080, 30
    %v1082 = vshll.u32 %v1081, 30
    %v1083 = vsub.s32 %v1079, %v1082
    %vm1084 = vcmp.lt.s32.totalorder %v1083, 0
    %v1085 = vsub.s32 0, %v1083
    %v1086 = vsel %vm1084, %v1085, %v1083
    %v1087 = vclz %v1086
    %v1088 = vsub.s32 %v1087, 2
    %vm1089 = vcmp.gt.s32.totalorder 0, %v1088
    %v1090 = vsel %vm1089, 0, %v1088
    %v1091 = vsub.s32 32, %v1090
    %v1092 = vshll.u32 %v1083, %v1090
    %v1093 = vshrl.u32 %v1075, %v1091
    %v1094 = vor.u32 %v1092, %v1093
    %v1095 = vsub.s32 4294967266, %v1090
    %v1096 = vadd.s32 %v1095, 127
    %v1097 = vshll.u32 %v1096, 23
    %v1098 = vor.u32 4788187, %v1097
    %v1099 = vand.u32 2147483647, %v1098
    %v1101 = vcvt.s32.f32 %v1094
    %v1102 = vmul.f32 %v1101, %v1099
    %v1103 = vxor.u32 %v1102, 2147483648
    %v1104 = vsel %vm983, %v1103, %v1102
    %v1105 = vsub.s32 4, %v1081
    %v1106 = vsel %vm983, %v1105, %v1081
    %v1107 = vsel %vm982, %v979, %v1104
    %v1108 = vsel %vm982, 0, %v1106
    %v1109 = vmul.f32 %v1107, %v1107
    %v1110 = vmul.f32 %v1109, -0.001358992
    %v1111 = vadd.f32 %v1110, 0.041655596
    %v1112 = vmul.f32 %v1109, %v1111
    %v1113 = vadd.f32 %v1112, -0.4999988
    %v1114 = vmul.f32 %v1109, %v1113
    %v1115 = vadd.f32 1.0, %v1114
    %v1116 = vmul.f32 %v1107, %v1107
    %v1117 = vmul.f32 %v1116, -0.00019511016
    %v1118 = vadd.f32 %v1117, 0.008332121
    %v1119 = vmul.f32 %v1116, %v1118
    %v1120 = vadd.f32 %v1119, -0.16666654
    %v1121 = vmul.f32 %v1116, %v1120
    %v1122 = vadd.f32 %v1121, 1.0
    %v1123 = vmul.f32 %v1122, %v1107
    %vm1124 = vweird.f32 %v979
    %v1125 = vadd.s32 %v1108, 3
    %v1126 = vand.u32 %v1125, 3
    %vm1127 = vcmp.lt.s32.totalorder %v1126, 2
    %vm1128 = vcmp.eq.s32.totalorder %v1126, 0
    %v1129 = vxor.u32 %v1123, 2147483648
    %v1130 = vsel %vm1128, %v1115, %v1129
    %vm1131 = vcmp.eq.s32.totalorder %v1126, 2
    %v1132 = vxor.u32 %v1115, 2147483648
    %v1133 = vsel %vm1131, %v1132, %v1123
    %v1134 = vsel %vm1127, %v1130, %v1133
    %v1135 = vsel %vm1124, nan, %v1134
    %v1136 = vand.u32 2147483647, %v980
    %vm1137 = vcmp.le.f32.partialorder %v1136, 0.7853982
    %vm1138 = vcmp.lt.s32.totalorder %v980, 0
    %v1139 = vand.u32 %v980, 2139095040
    %v1140 = vshrl.u32 %v1139, 23
    %v1141 = vsub.s32 %v1140, 127
    %v1142 = vand.u32 2147483647, %v980
    %v1143 = vand.u32 %v1142, 8388607
    %v1144 = vor.u32 %v1143, 8388608
    %v1145 = vsub.s32 0, %v1144
    %v1146 = vadd.s32 %v1141, 1
    %vm1147 = vcmp.gt.s32.totalorder %v1146, 0
    %v1148 = vsel %vm1147, %v1146, 0
    %v1149 = vshrl.u32 %v1148, 5
    %v1150 = vand.u32 %v1148, 31
    %v1151 = vsub.s32 32, %v1150
    %v1152 = vshrl.u32 683565275, %v1151
    %v1153 = vshll.u32 683565275, %v1150
    %v1154 = vshrl.u32 2475754826, %v1151
    %v1155 = vor.u32 %v1153, %v1154
    %v1156 = vshll.u32 2475754826, %v1150
    %v1157 = vshrl.u32 2131351028, %v1151
    %v1158 = vor.u32 %v1156, %v1157
    %v1159 = vshll.u32 2131351028, %v1150
    %v1160 = vshrl.u32 2102212464, %v1151
    %v1161 = vor.u32 %v1159, %v1160
    %v1162 = vshll.u32 2102212464, %v1150
    %v1163 = vshrl.u32 920167782, %v1151
    %v1164 = vor.u32 %v1162, %v1163
    %v1165 = vshll.u32 920167782, %v1150
    %v1166 = vshrl.u32 1326507024, %v1151
    %v1167 = vor.u32 %v1165, %v1166
    %vm1168 = vcmp.lt.s32.totalorder %v1149, 1
    %vm1169 = vcmp.lt.s32.totalorder %v1149, 2
    %vm1170 = vcmp.lt.s32.totalorder %v1149, 3
    %vm1171 = vcmp.lt.s32.totalorder %v1149, 4
    %v1172 = vsel %vm1168, %v1152, %v1155
    %v1173 = vsel %vm1171, %v1161, 2102212464
    %v1174 = vsel %vm1170, %v1158, %v1173
    %v1175 = vsel %vm1169, %v1172, %v1174
    %v1176 = vsel %vm1168, %v1155, %v1158
    %v1177 = vsel %vm1171, %v1164, 920167782
    %v1178 = vsel %vm1170, %v1161, %v1177
    %v1179 = vsel %vm1169, %v1176, %v1178
    %v1180 = vsel %vm1168, %v1158, %v1161
    %v1181 = vsel %vm1171, %v1167, 1326507024
    %v1182 = vsel %vm1170, %v1164, %v1181
    %v1183 = vsel %vm1169, %v1180, %v1182
    %v1184 = vshll.u32 %v1144, 8
    %v1185 = vand.u32 %v1184, 65535
    %v1186 = vshrl.u32 %v1184, 16
    %v1187 = vand.u32 %v1183, 65535
    %v1188 = vshrl.u32 %v1183, 16
    %v1189 = vmul.u32 %v1185, %v1187
    %v1190 = vmul.u32 %v1185, %v1188
    %v1191 = vmul.u32 %v1186, %v1187
    %v1192 = vmul.u32 %v1186, %v1188
    %v1193 = vshll.u32 %v1190, 16
    %v1194 = vshrl.u32 %v1190, 16
    %v1195 = vshll.u32 %v1191, 16
    %v1196 = vshrl.u32 %v1191, 16
    %vm1197 = vc.u32 %v1189, %v1193
    %v1198 = vsel %vm1197, 1, 0
    %v1199 = vadd.s32 %v1189, %v1193
    %v1200 = vadd.s32 %v1192, %v1198
    %vm1201 = vc.u32 %v1199, %v1195
    %v1202 = vsel %vm1201, 1, 0
    %v1203 = vadd.s32 %v1199, %v1195
    %v1204 = vadd.s32 %v1200, %v1202
    %v1205 = vadd.s32 %v1204, %v1194
    %v1206 = vadd.s32 %v1205, %v1196
    %v1207 = vand.u32 %v1184, 65535
    %v1208 = vshrl.u32 %v1184, 16
    %v1209 = vand.u32 %v1179, 65535
    %v1210 = vshrl.u32 %v1179, 16
    %v1211 = vmul.u32 %v1207, %v1209
    %v1212 = vmul.u32 %v1207, %v1210
    %v1213 = vmul.u32 %v1208, %v1209
    %v1214 = vmul.u32 %v1208, %v1210
    %v1215 = vshll.u32 %v1212, 16
    %v1216 = vshrl.u32 %v1212, 16
    %v1217 = vshll.u32 %v1213, 16
    %v1218 = vshrl.u32 %v1213, 16
    %vm1219 = vc.u32 %v1211, %v1215
    %v1220 = vsel %vm1219, 1, 0
    %v1221 = vadd.s32 %v1211, %v1215
    %v1222 = vadd.s32 %v1214, %v1220
    %vm1223 = vc.u32 %v1221, %v1217
    %v1224 = vsel %vm1223, 1, 0
    %v1225 = vadd.s32 %v1221, %v1217
    %v1226 = vadd.s32 %v1222, %v1224
    %v1227 = vadd.s32 %v1226, %v1216
    %v1228 = vadd.s32 %v1227, %v1218
    %v1229 = vmul.u32 %v1184, %v1175
    %v1230 = vadd.s32 %v1206, %v1225
    %vm1231 = vc.u32 %v1206, %v1225
    %v1232 = vadd.s32 %v1228, 1
    %v1233 = vsel %vm1231, %v1232, %v1228
    %v1234 = vadd.s32 %v1229, %v1233
    %v1235 = vadd.s32 %v1234, 536870912
    %v1236 = vshrl.u32 %v1235, 30
    %v1237 = vshll.u32 %v1236, 30
    %v1238 = vsub.s32 %v1234, %v1237
    %vm1239 = vcmp.lt.s32.totalorder %v1238, 0
    %v1240 = vsub.s32 0, %v1238
    %v1241 = vsel %vm1239, %v1240, %v1238
    %v1242 = vclz %v1241
    %v1243 = vsub.s32 %v1242, 2
    %vm1244 = vcmp.gt.s32.totalorder 0, %v1243
    %v1245 = vsel %vm1244, 0, %v1243
    %v1246 = vsub.s32 32, %v1245
    %v1247 = vshll.u32 %v1238, %v1245
    %v1248 = vshrl.u32 %v1230, %v1246
    %v1249 = vor.u32 %v1247, %v1248
    %v1250 = vsub.s32 4294967266, %v1245
    %v1251 = vadd.s32 %v1250, 127
    %v1252 = vshll.u32 %v1251, 23
    %v1253 = vor.u32 4788187, %v1252
    %v1254 = vand.u32 2147483647, %v1253
    %v1256 = vcvt.s32.f32 %v1249
    %v1257 = vmul.f32 %v1256, %v1254
    %v1258 = vxor.u32 %v1257, 2147483648
    %v1259 = vsel %vm1138, %v1258, %v1257
    %v1260 = vsub.s32 4, %v1236
    %v1261 = vsel %vm1138, %v1260, %v1236
    %v1262 = vsel %vm1137, %v980, %v1259
    %v1263 = vsel %vm1137, 0, %v1261
    %v1264 = vmul.f32 %v1262, %v1262
    %v1265 = vmul.f32 %v1264, -0.001358992
    %v1266 = vadd.f32 %v1265, 0.041655596
    %v1267 = vmul.f32 %v1264, %v1266
    %v1268 = vadd.f32 %v1267, -0.4999988
    %v1269 = vmul.f32 %v1264, %v1268
    %v1270 = vadd.f32 1.0, %v1269
    %v1271 = vmul.f32 %v1262, %v1262
    %v1272 = vmul.f32 %v1271, -0.00019511016
    %v1273 = vadd.f32 %v1272, 0.008332121
    %v1274 = vmul.f32 %v1271, %v1273
    %v1275 = vadd.f32 %v1274, -0.16666654
    %v1276 = vmul.f32 %v1271, %v1275
    %v1277 = vadd.f32 %v1276, 1.0
    %v1278 = vmul.f32 %v1277, %v1262
    %vm1279 = vweird.f32 %v980
    %v1280 = vadd.s32 %v1263, 3
    %v1281 = vand.u32 %v1280, 3
    %vm1282 = vcmp.lt.s32.totalorder %v1281, 2
    %vm1283 = vcmp.eq.s32.totalorder %v1281, 0
    %v1284 = vxor.u32 %v1278, 2147483648
    %v1285 = vsel %vm1283, %v1270, %v1284
    %vm1286 = vcmp.eq.s32.totalorder %v1281, 2
    %v1287 = vxor.u32 %v1270, 2147483648
    %v1288 = vsel %vm1286, %v1287, %v1278
    %v1289 = vsel %vm1282, %v1285, %v1288
    %v1290 = vsel %vm1279, nan, %v1289
    %v1291 = vmul.f32 %v977, %v1135
    %v1292 = vmul.f32 %v978, %v1290
    %1293 = vst [vmem:[#allocation7] sm:$0xff] %v957
    %1294 = vst [vmem:[#allocation7 + $0x10] sm:$0xff] %v958
    %1295 = vst [vmem:[#allocation8] sm:$0xff] %v977
    %1296 = vst [vmem:[#allocation8 + $0x10] sm:$0xff] %v978
    %1297 = vst [vmem:[#allocation10] sm:$0xff] %v1291
    %1298 = vst [vmem:[#allocation10 + $0x10] sm:$0xff] %v1292
    %1299 = vadd.xlane.f32.xlu0 %v1291
    %v1300 = vpop.xlane.xlu0 %1299
    %1301 = vadd.xlane.f32.xlu0 %v1292
    %v1302 = vpop.xlane.xlu0 %1301
    %v1303 = vadd.f32 %v1300, 0.0
    %v1304 = vadd.f32 %v1302, 0.0
    %v1305 = vperm.slane %v76, 0
    %v1306 = vmul.f32 %v83, %v1305
    %v1307 = vmul.f32 %v88, %v1305
    %v1308 = vperm.slane %v76, 1
    %v1309 = vmul.f32 %v95, %v1308
    %v1310 = vmul.f32 %v99, %v1308
    %v1311 = vadd.f32 %v1306, %v1309
    %v1312 = vadd.f32 %v1307, %v1310
    %1315 = vrot.lane.b32.xlu0 %v1311, 32
    %v1316 = vpop.permute.xlu0 %1315
    %1317 = vrot.lane.b32.xlu0 %v1312, 32
    %v1318 = vpop.permute.xlu0 %1317
    %1321 = vrot.lane.b32.xlu0 %v1311, 64
    %v1322 = vpop.permute.xlu0 %1321
    %1323 = vrot.lane.b32.xlu0 %v1312, 64
    %v1324 = vpop.permute.xlu0 %1323
    %1327 = vrot.lane.b32.xlu0 %v1311, 96
    %v1328 = vpop.permute.xlu0 %1327
    %1329 = vrot.lane.b32.xlu0 %v1312, 96
    %v1330 = vpop.permute.xlu0 %1329
    %v1333 = vsel %vm945, %v1311, %v1316
    %v1334 = vsel %vm945, %v1312, %v1318
    %v1335 = vsel %vm948, %v1333, %v1322
    %v1336 = vsel %vm948, %v1334, %v1324
    %v1337 = vsel %vm438, %v1335, %v1328
    %v1338 = vsel %vm438, %v1336, %v1330
    %v1339 = vperm.slane %v77, 1
    %v1340 = vmul.f32 %v1337, %v1339
    %v1341 = vmul.f32 %v1338, %v1339
    %v1342 = vperm.slane %v78, 1
    %v1343 = vadd.f32 %v1340, %v1342
    %v1344 = vadd.f32 %v1341, %v1342
    %1345 = vmax.xlane.f32.xlu0 %v869
    %v1346 = vpop.xlane.xlu0 %1345
    %1347 = vmax.xlane.f32.xlu0 %v872
    %v1348 = vpop.xlane.xlu0 %1347
    %v1349 = vsub.f32 %v869, %v1346
    %v1350 = vsub.f32 %v872, %v1348
    %v1351 = vmul.f32 %v1349, 1.442695
    %v1352 = vpow.pop %v1351
    %v1353 = vmul.f32 %v1350, 1.442695
    %v1354 = vpow.pop %v1353
    %1355 = vadd.xlane.f32.xlu0 %v1352
    %v1356 = vpop.xlane.xlu0 %1355
    %1357 = vadd.xlane.f32.xlu0 %v1354
    %v1358 = vpop.xlane.xlu0 %1357
    %v1359 = vmul.f32 %v1352, 5.0
    %v1360 = vmul.f32 %v1354, 5.0
    %v1361 = vrcp.pop %v1356
    %v1362 = vrcp.pop %v1358
    %v1363 = vmul.f32 %v1359, %v1361
    %v1364 = vmul.f32 %v1360, %v1362
    %v1365 = vadd.f32 %v1343, %v915
    %v1366 = vadd.f32 %v1344, %v916
    %v1367 = vand.u32 2147483647, %v1365
    %vm1368 = vcmp.le.f32.partialorder %v1367, 0.7853982
    %vm1369 = vcmp.lt.s32.totalorder %v1365, 0
    %v1370 = vand.u32 %v1365, 2139095040
    %v1371 = vshrl.u32 %v1370, 23
    %v1372 = vsub.s32 %v1371, 127
    %v1373 = vand.u32 2147483647, %v1365
    %v1374 = vand.u32 %v1373, 8388607
    %v1375 = vor.u32 %v1374, 8388608
    %v1376 = vsub.s32 0, %v1375
    %v1377 = vadd.s32 %v1372, 1
    %vm1378 = vcmp.gt.s32.totalorder %v1377, 0
    %v1379 = vsel %vm1378, %v1377, 0
    %v1380 = vshrl.u32 %v1379, 5
    %v1381 = vand.u32 %v1379, 31
    %v1382 = vsub.s32 32, %v1381
    %v1383 = vshrl.u32 683565275, %v1382
    %v1384 = vshll.u32 683565275, %v1381
    %v1385 = vshrl.u32 2475754826, %v1382
    %v1386 = vor.u32 %v1384, %v1385
    %v1387 = vshll.u32 2475754826, %v1381
    %v1388 = vshrl.u32 2131351028, %v1382
    %v1389 = vor.u32 %v1387, %v1388
    %v1390 = vshll.u32 2131351028, %v1381
    %v1391 = vshrl.u32 2102212464, %v1382
    %v1392 = vor.u32 %v1390, %v1391
    %v1393 = vshll.u32 2102212464, %v1381
    %v1394 = vshrl.u32 920167782, %v1382
    %v1395 = vor.u32 %v1393, %v1394
    %v1396 = vshll.u32 920167782, %v1381
    %v1397 = vshrl.u32 1326507024, %v1382
    %v1398 = vor.u32 %v1396, %v1397
    %vm1399 = vcmp.lt.s32.totalorder %v1380, 1
    %vm1400 = vcmp.lt.s32.totalorder %v1380, 2
    %vm1401 = vcmp.lt.s32.totalorder %v1380, 3
    %vm1402 = vcmp.lt.s32.totalorder %v1380, 4
    %v1403 = vsel %vm1399, %v1383, %v1386
    %v1404 = vsel %vm1402, %v1392, 2102212464
    %v1405 = vsel %vm1401, %v1389, %v1404
    %v1406 = vsel %vm1400, %v1403, %v1405
    %v1407 = vsel %vm1399, %v1386, %v1389
    %v1408 = vsel %vm1402, %v1395, 920167782
    %v1409 = vsel %vm1401, %v1392, %v1408
    %v1410 = vsel %vm1400, %v1407, %v1409
    %v1411 = vsel %vm1399, %v1389, %v1392
    %v1412 = vsel %vm1402, %v1398, 1326507024
    %v1413 = vsel %vm1401, %v1395, %v1412
    %v1414 = vsel %vm1400, %v1411, %v1413
    %v1415 = vshll.u32 %v1375, 8
    %v1416 = vand.u32 %v1415, 65535
    %v1417 = vshrl.u32 %v1415, 16
    %v1418 = vand.u32 %v1414, 65535
    %v1419 = vshrl.u32 %v1414, 16
    %v1420 = vmul.u32 %v1416, %v1418
    %v1421 = vmul.u32 %v1416, %v1419
    %v1422 = vmul.u32 %v1417, %v1418
    %v1423 = vmul.u32 %v1417, %v1419
    %v1424 = vshll.u32 %v1421, 16
    %v1425 = vshrl.u32 %v1421, 16
    %v1426 = vshll.u32 %v1422, 16
    %v1427 = vshrl.u32 %v1422, 16
    %vm1428 = vc.u32 %v1420, %v1424
    %v1429 = vsel %vm1428, 1, 0
    %v1430 = vadd.s32 %v1420, %v1424
    %v1431 = vadd.s32 %v1423, %v1429
    %vm1432 = vc.u32 %v1430, %v1426
    %v1433 = vsel %vm1432, 1, 0
    %v1434 = vadd.s32 %v1430, %v1426
    %v1435 = vadd.s32 %v1431, %v1433
    %v1436 = vadd.s32 %v1435, %v1425
    %v1437 = vadd.s32 %v1436, %v1427
    %v1438 = vand.u32 %v1415, 65535
    %v1439 = vshrl.u32 %v1415, 16
    %v1440 = vand.u32 %v1410, 65535
    %v1441 = vshrl.u32 %v1410, 16
    %v1442 = vmul.u32 %v1438, %v1440
    %v1443 = vmul.u32 %v1438, %v1441
    %v1444 = vmul.u32 %v1439, %v1440
    %v1445 = vmul.u32 %v1439, %v1441
    %v1446 = vshll.u32 %v1443, 16
    %v1447 = vshrl.u32 %v1443, 16
    %v1448 = vshll.u32 %v1444, 16
    %v1449 = vshrl.u32 %v1444, 16
    %vm1450 = vc.u32 %v1442, %v1446
    %v1451 = vsel %vm1450, 1, 0
    %v1452 = vadd.s32 %v1442, %v1446
    %v1453 = vadd.s32 %v1445, %v1451
    %vm1454 = vc.u32 %v1452, %v1448
    %v1455 = vsel %vm1454, 1, 0
    %v1456 = vadd.s32 %v1452, %v1448
    %v1457 = vadd.s32 %v1453, %v1455
    %v1458 = vadd.s32 %v1457, %v1447
    %v1459 = vadd.s32 %v1458, %v1449
    %v1460 = vmul.u32 %v1415, %v1406
    %v1461 = vadd.s32 %v1437, %v1456
    %vm1462 = vc.u32 %v1437, %v1456
    %v1463 = vadd.s32 %v1459, 1
    %v1464 = vsel %vm1462, %v1463, %v1459
    %v1465 = vadd.s32 %v1460, %v1464
    %v1466 = vadd.s32 %v1465, 536870912
    %v1467 = vshrl.u32 %v1466, 30
    %v1468 = vshll.u32 %v1467, 30
    %v1469 = vsub.s32 %v1465, %v1468
    %vm1470 = vcmp.lt.s32.totalorder %v1469, 0
    %v1471 = vsub.s32 0, %v1469
    %v1472 = vsel %vm1470, %v1471, %v1469
    %v1473 = vclz %v1472
    %v1474 = vsub.s32 %v1473, 2
    %vm1475 = vcmp.gt.s32.totalorder 0, %v1474
    %v1476 = vsel %vm1475, 0, %v1474
    %v1477 = vsub.s32 32, %v1476
    %v1478 = vshll.u32 %v1469, %v1476
    %v1479 = vshrl.u32 %v1461, %v1477
    %v1480 = vor.u32 %v1478, %v1479
    %v1481 = vsub.s32 4294967266, %v1476
    %v1482 = vadd.s32 %v1481, 127
    %v1483 = vshll.u32 %v1482, 23
    %v1484 = vor.u32 4788187, %v1483
    %v1485 = vand.u32 2147483647, %v1484
    %v1487 = vcvt.s32.f32 %v1480
    %v1488 = vmul.f32 %v1487, %v1485
    %v1489 = vxor.u32 %v1488, 2147483648
    %v1490 = vsel %vm1369, %v1489, %v1488
    %v1491 = vsub.s32 4, %v1467
    %v1492 = vsel %vm1369, %v1491, %v1467
    %v1493 = vsel %vm1368, %v1365, %v1490
    %v1494 = vsel %vm1368, 0, %v1492
    %v1495 = vmul.f32 %v1493, %v1493
    %v1496 = vmul.f32 %v1495, -0.001358992
    %v1497 = vadd.f32 %v1496, 0.041655596
    %v1498 = vmul.f32 %v1495, %v1497
    %v1499 = vadd.f32 %v1498, -0.4999988
    %v1500 = vmul.f32 %v1495, %v1499
    %v1501 = vadd.f32 1.0, %v1500
    %v1502 = vmul.f32 %v1493, %v1493
    %v1503 = vmul.f32 %v1502, -0.00019511016
    %v1504 = vadd.f32 %v1503, 0.008332121
    %v1505 = vmul.f32 %v1502, %v1504
    %v1506 = vadd.f32 %v1505, -0.16666654
    %v1507 = vmul.f32 %v1502, %v1506
    %v1508 = vadd.f32 %v1507, 1.0
    %v1509 = vmul.f32 %v1508, %v1493
    %vm1510 = vweird.f32 %v1365
    %v1511 = vadd.s32 %v1494, 3
    %v1512 = vand.u32 %v1511, 3
    %vm1513 = vcmp.lt.s32.totalorder %v1512, 2
    %vm1514 = vcmp.eq.s32.totalorder %v1512, 0
    %v1515 = vxor.u32 %v1509, 2147483648
    %v1516 = vsel %vm1514, %v1501, %v1515
    %vm1517 = vcmp.eq.s32.totalorder %v1512, 2
    %v1518 = vxor.u32 %v1501, 2147483648
    %v1519 = vsel %vm1517, %v1518, %v1509
    %v1520 = vsel %vm1513, %v1516, %v1519
    %v1521 = vsel %vm1510, nan, %v1520
    %v1522 = vand.u32 2147483647, %v1366
    %vm1523 = vcmp.le.f32.partialorder %v1522, 0.7853982
    %vm1524 = vcmp.lt.s32.totalorder %v1366, 0
    %v1525 = vand.u32 %v1366, 2139095040
    %v1526 = vshrl.u32 %v1525, 23
    %v1527 = vsub.s32 %v1526, 127
    %v1528 = vand.u32 2147483647, %v1366
    %v1529 = vand.u32 %v1528, 8388607
    %v1530 = vor.u32 %v1529, 8388608
    %v1531 = vsub.s32 0, %v1530
    %v1532 = vadd.s32 %v1527, 1
    %vm1533 = vcmp.gt.s32.totalorder %v1532, 0
    %v1534 = vsel %vm1533, %v1532, 0
    %v1535 = vshrl.u32 %v1534, 5
    %v1536 = vand.u32 %v1534, 31
    %v1537 = vsub.s32 32, %v1536
    %v1538 = vshrl.u32 683565275, %v1537
    %v1539 = vshll.u32 683565275, %v1536
    %v1540 = vshrl.u32 2475754826, %v1537
    %v1541 = vor.u32 %v1539, %v1540
    %v1542 = vshll.u32 2475754826, %v1536
    %v1543 = vshrl.u32 2131351028, %v1537
    %v1544 = vor.u32 %v1542, %v1543
    %v1545 = vshll.u32 2131351028, %v1536
    %v1546 = vshrl.u32 2102212464, %v1537
    %v1547 = vor.u32 %v1545, %v1546
    %v1548 = vshll.u32 2102212464, %v1536
    %v1549 = vshrl.u32 920167782, %v1537
    %v1550 = vor.u32 %v1548, %v1549
    %v1551 = vshll.u32 920167782, %v1536
    %v1552 = vshrl.u32 1326507024, %v1537
    %v1553 = vor.u32 %v1551, %v1552
    %vm1554 = vcmp.lt.s32.totalorder %v1535, 1
    %vm1555 = vcmp.lt.s32.totalorder %v1535, 2
    %vm1556 = vcmp.lt.s32.totalorder %v1535, 3
    %vm1557 = vcmp.lt.s32.totalorder %v1535, 4
    %v1558 = vsel %vm1554, %v1538, %v1541
    %v1559 = vsel %vm1557, %v1547, 2102212464
    %v1560 = vsel %vm1556, %v1544, %v1559
    %v1561 = vsel %vm1555, %v1558, %v1560
    %v1562 = vsel %vm1554, %v1541, %v1544
    %v1563 = vsel %vm1557, %v1550, 920167782
    %v1564 = vsel %vm1556, %v1547, %v1563
    %v1565 = vsel %vm1555, %v1562, %v1564
    %v1566 = vsel %vm1554, %v1544, %v1547
    %v1567 = vsel %vm1557, %v1553, 1326507024
    %v1568 = vsel %vm1556, %v1550, %v1567
    %v1569 = vsel %vm1555, %v1566, %v1568
    %v1570 = vshll.u32 %v1530, 8
    %v1571 = vand.u32 %v1570, 65535
    %v1572 = vshrl.u32 %v1570, 16
    %v1573 = vand.u32 %v1569, 65535
    %v1574 = vshrl.u32 %v1569, 16
    %v1575 = vmul.u32 %v1571, %v1573
    %v1576 = vmul.u32 %v1571, %v1574
    %v1577 = vmul.u32 %v1572, %v1573
    %v1578 = vmul.u32 %v1572, %v1574
    %v1579 = vshll.u32 %v1576, 16
    %v1580 = vshrl.u32 %v1576, 16
    %v1581 = vshll.u32 %v1577, 16
    %v1582 = vshrl.u32 %v1577, 16
    %vm1583 = vc.u32 %v1575, %v1579
    %v1584 = vsel %vm1583, 1, 0
    %v1585 = vadd.s32 %v1575, %v1579
    %v1586 = vadd.s32 %v1578, %v1584
    %vm1587 = vc.u32 %v1585, %v1581
    %v1588 = vsel %vm1587, 1, 0
    %v1589 = vadd.s32 %v1585, %v1581
    %v1590 = vadd.s32 %v1586, %v1588
    %v1591 = vadd.s32 %v1590, %v1580
    %v1592 = vadd.s32 %v1591, %v1582
    %v1593 = vand.u32 %v1570, 65535
    %v1594 = vshrl.u32 %v1570, 16
    %v1595 = vand.u32 %v1565, 65535
    %v1596 = vshrl.u32 %v1565, 16
    %v1597 = vmul.u32 %v1593, %v1595
    %v1598 = vmul.u32 %v1593, %v1596
    %v1599 = vmul.u32 %v1594, %v1595
    %v1600 = vmul.u32 %v1594, %v1596
    %v1601 = vshll.u32 %v1598, 16
    %v1602 = vshrl.u32 %v1598, 16
    %v1603 = vshll.u32 %v1599, 16
    %v1604 = vshrl.u32 %v1599, 16
    %vm1605 = vc.u32 %v1597, %v1601
    %v1606 = vsel %vm1605, 1, 0
    %v1607 = vadd.s32 %v1597, %v1601
    %v1608 = vadd.s32 %v1600, %v1606
    %vm1609 = vc.u32 %v1607, %v1603
    %v1610 = vsel %vm1609, 1, 0
    %v1611 = vadd.s32 %v1607, %v1603
    %v1612 = vadd.s32 %v1608, %v1610
    %v1613 = vadd.s32 %v1612, %v1602
    %v1614 = vadd.s32 %v1613, %v1604
    %v1615 = vmul.u32 %v1570, %v1561
    %v1616 = vadd.s32 %v1592, %v1611
    %vm1617 = vc.u32 %v1592, %v1611
    %v1618 = vadd.s32 %v1614, 1
    %v1619 = vsel %vm1617, %v1618, %v1614
    %v1620 = vadd.s32 %v1615, %v1619
    %v1621 = vadd.s32 %v1620, 536870912
    %v1622 = vshrl.u32 %v1621, 30
    %v1623 = vshll.u32 %v1622, 30
    %v1624 = vsub.s32 %v1620, %v1623
    %vm1625 = vcmp.lt.s32.totalorder %v1624, 0
    %v1626 = vsub.s32 0, %v1624
    %v1627 = vsel %vm1625, %v1626, %v1624
    %v1628 = vclz %v1627
    %v1629 = vsub.s32 %v1628, 2
    %vm1630 = vcmp.gt.s32.totalorder 0, %v1629
    %v1631 = vsel %vm1630, 0, %v1629
    %v1632 = vsub.s32 32, %v1631
    %v1633 = vshll.u32 %v1624, %v1631
    %v1634 = vshrl.u32 %v1616, %v1632
    %v1635 = vor.u32 %v1633, %v1634
    %v1636 = vsub.s32 4294967266, %v1631
    %v1637 = vadd.s32 %v1636, 127
    %v1638 = vshll.u32 %v1637, 23
    %v1639 = vor.u32 4788187, %v1638
    %v1640 = vand.u32 2147483647, %v1639
    %v1642 = vcvt.s32.f32 %v1635
    %v1643 = vmul.f32 %v1642, %v1640
    %v1644 = vxor.u32 %v1643, 2147483648
    %v1645 = vsel %vm1524, %v1644, %v1643
    %v1646 = vsub.s32 4, %v1622
    %v1647 = vsel %vm1524, %v1646, %v1622
    %v1648 = vsel %vm1523, %v1366, %v1645
    %v1649 = vsel %vm1523, 0, %v1647
    %v1650 = vmul.f32 %v1648, %v1648
    %v1651 = vmul.f32 %v1650, -0.001358992
    %v1652 = vadd.f32 %v1651, 0.041655596
    %v1653 = vmul.f32 %v1650, %v1652
    %v1654 = vadd.f32 %v1653, -0.4999988
    %v1655 = vmul.f32 %v1650, %v1654
    %v1656 = vadd.f32 1.0, %v1655
    %v1657 = vmul.f32 %v1648, %v1648
    %v1658 = vmul.f32 %v1657, -0.00019511016
    %v1659 = vadd.f32 %v1658, 0.008332121
    %v1660 = vmul.f32 %v1657, %v1659
    %v1661 = vadd.f32 %v1660, -0.16666654
    %v1662 = vmul.f32 %v1657, %v1661
    %v1663 = vadd.f32 %v1662, 1.0
    %v1664 = vmul.f32 %v1663, %v1648
    %vm1665 = vweird.f32 %v1366
    %v1666 = vadd.s32 %v1649, 3
    %v1667 = vand.u32 %v1666, 3
    %vm1668 = vcmp.lt.s32.totalorder %v1667, 2
    %vm1669 = vcmp.eq.s32.totalorder %v1667, 0
    %v1670 = vxor.u32 %v1664, 2147483648
    %v1671 = vsel %vm1669, %v1656, %v1670
    %vm1672 = vcmp.eq.s32.totalorder %v1667, 2
    %v1673 = vxor.u32 %v1656, 2147483648
    %v1674 = vsel %vm1672, %v1673, %v1664
    %v1675 = vsel %vm1668, %v1671, %v1674
    %v1676 = vsel %vm1665, nan, %v1675
    %v1677 = vmul.f32 %v1363, %v1521
    %v1678 = vmul.f32 %v1364, %v1676
    %1679 = vst [vmem:[#allocation7 + $0x8] sm:$0xff] %v1343
    %1680 = vst [vmem:[#allocation7 + $0x18] sm:$0xff] %v1344
    %1681 = vst [vmem:[#allocation8 + $0x8] sm:$0xff] %v1363
    %1682 = vst [vmem:[#allocation8 + $0x18] sm:$0xff] %v1364
    %1683 = vst [vmem:[#allocation10 + $0x8] sm:$0xff] %v1677
    %1684 = vst [vmem:[#allocation10 + $0x18] sm:$0xff] %v1678
    %1685 = vadd.xlane.f32.xlu0 %v1677
    %v1686 = vpop.xlane.xlu0 %1685
    %1687 = vadd.xlane.f32.xlu0 %v1678
    %v1688 = vpop.xlane.xlu0 %1687
    %v1689 = vadd.f32 %v1303, %v1686
    %v1690 = vadd.f32 %v1304, %v1688
    %vm1691 = vcmask 7168
    %1692 = vst.msk [vmem:[%s10] sm:$0xff] %vm1691, %v1689
    %1693 = vst.msk [vmem:[%s10 + $0x8] sm:$0xff] %vm1691, %v1690
    // Predicated region
    $region50: #{tpu_custom_call.1} parent=1 // pred_check
      _
    $region51: #{tpu_custom_call.1} parent=1 // pred_check_branch
      %1695 = sbr.rel (0) target = $region53
    $region52: #{tpu_custom_call.1} parent=1 // pred_region
      _
    $region53: #{tpu_custom_call.1} parent=1 // pred_fallthru
      _
    // Predicated region
    $region54: #{tpu_custom_call.1} parent=1 // pred_check
      _
    $region55: #{tpu_custom_call.1} parent=1 // pred_check_branch
      %1697 = sbr.rel (0) target = $region57
    $region56: #{tpu_custom_call.1} parent=1 // pred_region
      %1699 = vsyncadd [#allocation4], 0
      %s1700 = sshll.u32 [#allocation7], 4
      %s1701 = int_to_ptr.vmem [resolvable:$true] %s1700
      %s1702 = sshll.u32 %s11, 4
      %s1703 = int_to_ptr.hbm [resolvable:$true] %s1702
      %1708 = dma.vmem_to_hbm [thread:$0]  %s1701, 512, %s1703, [#allocation4], 256, 256, 16
    $region57: #{tpu_custom_call.1} parent=1 // pred_fallthru
      _
    // Predicated region
    $region58: #{tpu_custom_call.1} parent=1 // pred_check
      _
    $region59: #{tpu_custom_call.1} parent=1 // pred_check_branch
      %1710 = sbr.rel (0) target = $region61
    $region60: #{tpu_custom_call.1} parent=1 // pred_region
      %1712 = vsyncadd [#allocation9], 0
      %s1713 = sshll.u32 [#allocation8], 4
      %s1714 = int_to_ptr.vmem [resolvable:$true] %s1713
      %s1715 = sshll.u32 %s12, 4
      %s1716 = int_to_ptr.hbm [resolvable:$true] %s1715
      %1721 = dma.vmem_to_hbm [thread:$0]  %s1714, 512, %s1716, [#allocation9], 256, 256, 16
    $region61: #{tpu_custom_call.1} parent=1 // pred_fallthru
      _
    // Predicated region
    $region62: #{tpu_custom_call.1} parent=1 // pred_check
      _
    $region63: #{tpu_custom_call.1} parent=1 // pred_check_branch
      %1723 = sbr.rel (0) target = $region65
    $region64: #{tpu_custom_call.1} parent=1 // pred_region
      %1725 = vsyncadd [#allocation9], 0
      %s1726 = sshll.u32 [#allocation10], 4
      %s1727 = int_to_ptr.vmem [resolvable:$true] %s1726
      %s1728 = sshll.u32 %s13, 4
      %s1729 = int_to_ptr.hbm [resolvable:$true] %s1728
      %1734 = dma.vmem_to_hbm [thread:$0]  %s1727, 512, %s1729, [#allocation9], 256, 256, 16
    $region65: #{tpu_custom_call.1} parent=1 // pred_fallthru
      _
    // Predicated region
    $region66: #{tpu_custom_call.1} parent=1 // pred_check
      _
    $region67: #{tpu_custom_call.1} parent=1 // pred_check_branch
      %1736 = sbr.rel (0) target = $region69
    $region68: #{tpu_custom_call.1} parent=1 // pred_region
      _
    $region69: #{tpu_custom_call.1} parent=1 // pred_fallthru
      _
    // Predicated region
    $region70: #{tpu_custom_call.1} parent=1 // pred_check
      _
    $region71: #{tpu_custom_call.1} parent=1 // pred_check_branch
      %1738 = sbr.rel (0) target = $region73
    $region72: #{tpu_custom_call.1} parent=1 // pred_region
      %1740 = dma.done [#allocation4], 512
    $region73: #{tpu_custom_call.1} parent=1 // pred_fallthru
      _
    // Predicated region
    $region74: #{tpu_custom_call.1} parent=1 // pred_check
      _
    $region75: #{tpu_custom_call.1} parent=1 // pred_check_branch
      %1742 = sbr.rel (0) target = $region77
    $region76: #{tpu_custom_call.1} parent=1 // pred_region
      %1744 = dma.done [#allocation9], 512
    $region77: #{tpu_custom_call.1} parent=1 // pred_fallthru
      _
    // Predicated region
    $region78: #{tpu_custom_call.1} parent=1 // pred_check
      _
    $region79: #{tpu_custom_call.1} parent=1 // pred_check_branch
      %1746 = sbr.rel (0) target = $region81
    $region80: #{tpu_custom_call.1} parent=1 // pred_region
      %1748 = dma.done [#allocation9], 512
    $region81: #{tpu_custom_call.1} parent=1 // pred_fallthru
      _
    %1749 = vsyncpa [#allocation3], 1
    %1750 = vsyncpa [#allocation6], 1
    %1751 = vsyncpa [#allocation4], 1
    %1752 = vsyncpa [#allocation9], 1

</llo_original>
